<compile_context>
chip_gen: v6e
topology: v6e:2x2x1
jax: 0.10.0
libtpu: 0.0.40
codegen_flags: <defaults>
</compile_context>

<pallas_src>
import functools
import math

import jax
import jax.numpy as jnp
from jax.experimental import pallas as pl
from jax.experimental.pallas import tpu as pltpu

_INV_SQRT2 = 0.7071067811865476
_BN_EPS = 1e-5

# ---- packed per-channel parameter slab layouts (lane index -> meaning) -----
# cpar: (C, 22)
_C_LPU_B = 0          # LPU conv bias
_C_DW_B = 1           # dw_b[i]    -> 1 + i          (i in 0..2)
_C_BN_G = 4           # bn_g[i]    -> 4 + i
_C_BN_B = 7           # bn_b[i]    -> 7 + i
_C_DW_W = 10          # dw_w[i, t] -> 10 + 3*i + t   (t in 0..2)
_C_F3_B = 19
_C_F3_G = 20
_C_F3_BE = 21
# epar: (E, 9)
_E_F1_B, _E_F1_G, _E_F1_BE = 0, 1, 2
_E_FD_W = 3           # fd_w[:, t] -> 3 + t
_E_FD_B, _E_F2_G, _E_F2_BE = 6, 7, 8


def _erf(x):
    # Abramowitz & Stegun 7.1.26 (|err| <= 1.5e-7): exp/mul/add + EUP recip.
    sign = jnp.where(x >= 0.0, 1.0, -1.0)
    ax = jnp.abs(x)
    d = 1.0 + 0.3275911 * ax
    t = pl.reciprocal(d, approx=True)     # EUP slot (has slack), no VPU divide
    t = t * (2.0 - d * t)                 # one Newton step -> full f32 accuracy
    poly = t * (0.254829592
                + t * (-0.284496736
                       + t * (1.421413741
                              + t * (-1.453152027 + t * 1.061405429))))
    return sign * (1.0 - poly * jnp.exp(-ax * ax))


def _gelu(x):
    # PyTorch nn.GELU() default (exact / erf based).
    return 0.5 * x * (1.0 + _erf(x * _INV_SQRT2))


# ---------------------------------------------------------------------------
# Pallas kernel: whole Block forward on a (C, NL_pad) slab.
# ---------------------------------------------------------------------------
def block_kernel(x_ref, lpu_w_ref, f1_w_ref, f3_w_ref, cpar_ref, epar_ref,
                 o_ref, *, seq_len, valid_cols, inv_count, eps):
    x = x_ref[...]                       # (C, NL_pad) float32
    nl = x.shape[1]

    # Sequence-boundary / validity masks from a single (1, NL) lane iota.
    lane = jax.lax.broadcasted_iota(jnp.int32, (1, nl), 1)
    pos = lane % seq_len
    mask_l = (pos != 0).astype(x.dtype)             # h[:, j-1] exists
    mask_r = (pos != seq_len - 1).astype(x.dtype)   # h[:, j+1] exists
    mask_v = (lane < valid_cols).astype(x.dtype)    # real (unpadded) column

    cp = cpar_ref[...]                   # (C, 22) packed per-channel params
    ep = epar_ref[...]                   # (E, 9)

    def col(m, k):                       # (rows, 1) lane slice of a packed slab
        return m[:, k:k + 1]

    def conv1x1(h, w_ref, b):
        # w: (Co, Ci) possibly bf16 -> MXU with f32 accumulation.
        w = w_ref[...]
        return jnp.dot(w, h.astype(w.dtype),
                       preferred_element_type=jnp.float32) + b

    def dwconv3(h, w0, w1, w2, b):
        # depthwise k=3 / stride 1 / pad 1 via lane rolls + boundary masks.
        hl = pltpu.roll(h, shift=1, axis=1) * mask_l        # h[:, j-1]
        hr = pltpu.roll(h, shift=nl - 1, axis=1) * mask_r   # h[:, j+1]
        return w0 * hl + w1 * h + w2 * hr + b

    def batchnorm(h, g, b):
        # training-mode BN over the valid N*L columns; single reduction pass,
        # folded affine: y = h*scale + shift.
        hv = h * mask_v
        mean = jnp.sum(hv, axis=1, keepdims=True) * inv_count
        ex2 = jnp.sum(hv * hv, axis=1, keepdims=True) * inv_count
        var = jnp.maximum(ex2 - mean * mean, 0.0)
        scale = g * jax.lax.rsqrt(var + eps)
        shift = b - mean * scale
        return h * scale + shift

    # ---- LPU: Conv1d(C,C,1)(x) + x --------------------------------------
    h = conv1x1(x, lpu_w_ref, col(cp, _C_LPU_B)) + x

    # ---- 3 x ( depthwise conv -> GELU -> BN ) -----------------------------
    for i in range(3):
        h = dwconv3(h,
                    col(cp, _C_DW_W + 3 * i),
                    col(cp, _C_DW_W + 3 * i + 1),
                    col(cp, _C_DW_W + 3 * i + 2),
                    col(cp, _C_DW_B + i))
        h = batchnorm(_gelu(h), col(cp, _C_BN_G + i), col(cp, _C_BN_B + i))

    # ---- IRFFN: h + conv2(dwconv(conv1(h))) -------------------------------
    t = _gelu(batchnorm(conv1x1(h, f1_w_ref, col(ep, _E_F1_B)),
                        col(ep, _E_F1_G), col(ep, _E_F1_BE)))
    t = _gelu(batchnorm(dwconv3(t, col(ep, _E_FD_W), col(ep, _E_FD_W + 1),
                                col(ep, _E_FD_W + 2), col(ep, _E_FD_B)),
                        col(ep, _E_F2_G), col(ep, _E_F2_BE)))
    t = batchnorm(conv1x1(t, f3_w_ref, col(cp, _C_F3_B)),
                  col(cp, _C_F3_G), col(cp, _C_F3_BE))

    o_ref[...] = h + t


# ---------------------------------------------------------------------------
# Wrapper: layout glue + parameter coalescing + pallas_call.
# ---------------------------------------------------------------------------
def _pack_params(p, mxu_dtype):
    cpar = jnp.concatenate(
        [p['lpu_b'],
         p['dw_b'][0], p['dw_b'][1], p['dw_b'][2],
         p['bn_g'][0], p['bn_g'][1], p['bn_g'][2],
         p['bn_b'][0], p['bn_b'][1], p['bn_b'][2],
         p['dw_w'][0], p['dw_w'][1], p['dw_w'][2],
         p['f3_b'], p['f3_g'], p['f3_be']], axis=1).astype(jnp.float32)
    epar = jnp.concatenate(
        [p['f1_b'], p['f1_g'], p['f1_be'],
         p['fd_w'],
         p['fd_b'], p['f2_g'], p['f2_be']], axis=1).astype(jnp.float32)
    mats = [p['lpu_w'], p['f1_w'], p['f3_w']]
    if mxu_dtype is not None:
        mats = [m.astype(mxu_dtype) for m in mats]
    return mats, cpar, epar


def block_forward(x, params, *, mxu_dtype=None):
    """x: (N, C, L) float32 -> (N, C, L) float32 (train-mode BN semantics)."""
    n, c, l = x.shape
    nl = n * l
    nl_pad = max(128, pl.cdiv(nl, 128) * 128)   # lane-dense tiles (unmasked vst)

    (lpu_w, f1_w, f3_w), cpar, epar = _pack_params(params, mxu_dtype)

    # glue: NCL -> channels-major (C, N*L) slab, zero-padded along lanes.
    x2 = jnp.transpose(x, (1, 0, 2)).reshape(c, nl)
    x2 = jnp.pad(x2, ((0, 0), (0, nl_pad - nl)))

    kernel = functools.partial(block_kernel, seq_len=l, valid_cols=nl,
                               inv_count=1.0 / nl, eps=_BN_EPS)
    out2 = pl.pallas_call(
        kernel,
        out_shape=jax.ShapeDtypeStruct((c, nl_pad), jnp.float32),
        in_specs=[pl.BlockSpec(memory_space=pltpu.MemorySpace.VMEM)] * 6,
        out_specs=pl.BlockSpec(memory_space=pltpu.MemorySpace.VMEM),
    )(x2, lpu_w, f1_w, f3_w, cpar, epar)

    return jnp.transpose(out2[:, :nl].reshape(c, n, l), (1, 0, 2))


# ---------------------------------------------------------------------------
# Deterministic parameter construction (shapes from Block.__init__,
# in_channels == out_channels == C so the grouped convs are valid).
# ---------------------------------------------------------------------------
def make_params(key, c, r=3.6):
    e = int(c * r)
    ks = jax.random.split(key, 18)

    def nrm(i, shape, scale):
        return scale * jax.random.normal(ks[i], shape, jnp.float32)

    return {
        'lpu_w': nrm(0, (c, c), 1.0 / math.sqrt(c)),      # Conv1d(C,C,1) weight
        'lpu_b': nrm(1, (c, 1), 0.1),
        'dw_w': nrm(2, (3, c, 3), 0.5),                   # DWConv1..3 weights
        'dw_b': nrm(3, (3, c, 1), 0.1),
        'bn_g': 1.0 + nrm(4, (3, c, 1), 0.1),             # bn1..3 gamma
        'bn_b': nrm(5, (3, c, 1), 0.1),                   # bn1..3 beta
        'f1_w': nrm(6, (e, c), 1.0 / math.sqrt(c)),       # IRFFN conv1
        'f1_b': nrm(7, (e, 1), 0.1),
        'f1_g': 1.0 + nrm(8, (e, 1), 0.1),
        'f1_be': nrm(9, (e, 1), 0.1),
        'fd_w': nrm(10, (e, 3), 0.5),                     # IRFFN depthwise
        'fd_b': nrm(11, (e, 1), 0.1),
        'f2_g': 1.0 + nrm(12, (e, 1), 0.1),
        'f2_be': nrm(13, (e, 1), 0.1),
        'f3_w': nrm(14, (c, e), 1.0 / math.sqrt(e)),      # IRFFN conv2
        'f3_b': nrm(15, (c, 1), 0.1),
        'f3_g': 1.0 + nrm(16, (c, 1), 0.1),
        'f3_be': nrm(17, (c, 1), 0.1),
    }


# ---------------------------------------------------------------------------
# Pure-JAX reference (independent formulation: pad/slice convs, exact erf).
# ---------------------------------------------------------------------------
def reference(x, p):
    def conv1x1(h, w, b):
        return jnp.einsum('oc,ncl->nol', w, h) + b[None]

    def dwconv3(h, w3, b):
        hp = jnp.pad(h, ((0, 0), (0, 0), (1, 1)))
        return (w3[None, :, 0:1] * hp[:, :, :-2]
                + w3[None, :, 1:2] * hp[:, :, 1:-1]
                + w3[None, :, 2:3] * hp[:, :, 2:] + b[None])

    def bn(h, g, b):
        mean = jnp.mean(h, axis=(0, 2), keepdims=True)
        var = jnp.mean(jnp.square(h - mean), axis=(0, 2), keepdims=True)
        return (h - mean) / jnp.sqrt(var + _BN_EPS) * g[None] + b[None]

    def gelu(h):
        return 0.5 * h * (1.0 + jax.scipy.special.erf(h * _INV_SQRT2))

    h = conv1x1(x, p['lpu_w'], p['lpu_b']) + x
    for i in range(3):
        h = bn(gelu(dwconv3(h, p['dw_w'][i], p['dw_b'][i])),
               p['bn_g'][i], p['bn_b'][i])
    t = gelu(bn(conv1x1(h, p['f1_w'], p['f1_b']), p['f1_g'], p['f1_be']))
    t = gelu(bn(dwconv3(t, p['fd_w'], p['fd_b']), p['f2_g'], p['f2_be']))
    t = bn(conv1x1(t, p['f3_w'], p['f3_b']), p['f3_g'], p['f3_be'])
    return h + t


if __name__ == "__main__":
    N, C, L = 2, 8, 16          # batch, channels, sequence length (NCL)
    key = jax.random.PRNGKey(0)
    k_x, k_p = jax.random.split(key)

    x = jax.random.normal(k_x, (N, C, L), jnp.float32)
    params = make_params(k_p, C)
    ref = reference(x, params)

    # 1) f32 MXU path: strict correctness gate.
    out = jax.block_until_ready(jax.jit(block_forward)(x, params))
    assert out.shape == (N, C, L)
    err = float(jnp.max(jnp.abs(out - ref)))
    assert err < 1e-3, f"f32 mismatch vs reference: max_err={err}"

    # 2) bf16 MXU-input path (2x MXU class on v6e/v7x, f32 accumulation):
    #    sanity-checked against the f32 reference with a bf16-appropriate bound.
    fwd_bf16 = jax.jit(functools.partial(block_forward, mxu_dtype=jnp.bfloat16))
    out_bf = jax.block_until_ready(fwd_bf16(x, params))
    err_bf = float(jnp.max(jnp.abs(out_bf - ref)))
    assert err_bf < 1e-1, f"bf16 mismatch vs reference: max_err={err_bf}"

    print("KERNEL_OK")
</pallas_src>

<mosaic_0001>
module attributes {stable_mosaic.version = 11 : i64} {
  func.func @block_kernel(%arg0: memref<8x128xf32, #tpu.memory_space<vmem>>, %arg1: memref<8x8xf32, #tpu.memory_space<vmem>>, %arg2: memref<28x8xf32, #tpu.memory_space<vmem>>, %arg3: memref<8x28xf32, #tpu.memory_space<vmem>>, %arg4: memref<8x22xf32, #tpu.memory_space<vmem>>, %arg5: memref<28x9xf32, #tpu.memory_space<vmem>>, %arg6: memref<8x128xf32, #tpu.memory_space<vmem>>) attributes {dimension_semantics = [], scalar_prefetch = 0 : i64, scratch_operands = 0 : i64, tpu.core_type = #tpu.core_type<tc>} {
    %c0 = arith.constant 0 : index
    %c0_0 = arith.constant 0 : index
    %0 = vector.load %arg0[%c0, %c0_0] : memref<8x128xf32, #tpu.memory_space<vmem>>, vector<8x128xf32>
    %1 = tpu.iota {dimensions = array<i32: 1>} : vector<1x128xi32>
    %c16_i32 = arith.constant 16 : i32
    %c0_i32 = arith.constant 0 : i32
    %2 = arith.cmpi eq, %c16_i32, %c0_i32 : i32
    %c1_i32 = arith.constant 1 : i32
    %3 = arith.select %2, %c1_i32, %c16_i32 : i32
    %4 = vector.broadcast %3 : i32 to vector<1x128xi32>
    %5 = arith.remsi %1, %4 : vector<1x128xi32>
    %c0_i32_1 = arith.constant 0 : i32
    %6 = vector.broadcast %c0_i32_1 : i32 to vector<1x128xi32>
    %7 = arith.cmpi ne, %5, %6 : vector<1x128xi32>
    %c0_i32_2 = arith.constant 0 : i32
    %8 = vector.broadcast %c0_i32_2 : i32 to vector<1x128xi32>
    %9 = arith.cmpi slt, %5, %8 : vector<1x128xi32>
    %c0_i32_3 = arith.constant 0 : i32
    %10 = arith.cmpi slt, %3, %c0_i32_3 : i32
    %11 = vector.broadcast %10 : i1 to vector<1x128xi1>
    %12 = vector.broadcast %11 : vector<1x128xi1> to vector<1x128xi1>
    %13 = arith.xori %9, %12 : vector<1x128xi1>
    %14 = arith.andi %13, %7 : vector<1x128xi1>
    %15 = vector.broadcast %3 : i32 to vector<1x128xi32>
    %16 = arith.addi %5, %15 : vector<1x128xi32>
    %17 = arith.select %14, %16, %5 : vector<1x128xi1>, vector<1x128xi32>
    %c0_i32_4 = arith.constant 0 : i32
    %18 = vector.broadcast %c0_i32_4 : i32 to vector<1x128xi32>
    %19 = arith.cmpi ne, %17, %18 : vector<1x128xi32>
    %20 = arith.extui %19 : vector<1x128xi1> to vector<1x128xi32>
    %21 = arith.sitofp %20 : vector<1x128xi32> to vector<1x128xf32>
    %c15_i32 = arith.constant 15 : i32
    %22 = vector.broadcast %c15_i32 : i32 to vector<1x128xi32>
    %23 = arith.cmpi ne, %17, %22 : vector<1x128xi32>
    %24 = arith.extui %23 : vector<1x128xi1> to vector<1x128xi32>
    %25 = arith.sitofp %24 : vector<1x128xi32> to vector<1x128xf32>
    %c32_i32 = arith.constant 32 : i32
    %26 = vector.broadcast %c32_i32 : i32 to vector<1x128xi32>
    %27 = arith.cmpi slt, %1, %26 : vector<1x128xi32>
    %28 = arith.extui %27 : vector<1x128xi1> to vector<1x128xi32>
    %29 = arith.sitofp %28 : vector<1x128xi32> to vector<1x128xf32>
    %c0_5 = arith.constant 0 : index
    %c0_6 = arith.constant 0 : index
    %30 = vector.load %arg4[%c0_5, %c0_6] : memref<8x22xf32, #tpu.memory_space<vmem>>, vector<8x22xf32>
    %c0_7 = arith.constant 0 : index
    %c0_8 = arith.constant 0 : index
    %31 = vector.load %arg5[%c0_7, %c0_8] : memref<28x9xf32, #tpu.memory_space<vmem>>, vector<28x9xf32>
    %32 = vector.extract_strided_slice %30 {offsets = [0, 0], sizes = [8, 1], strides = [1, 1]} : vector<8x22xf32> to vector<8x1xf32>
    %c0_9 = arith.constant 0 : index
    %c0_10 = arith.constant 0 : index
    %33 = vector.load %arg1[%c0_9, %c0_10] : memref<8x8xf32, #tpu.memory_space<vmem>>, vector<8x8xf32>
    %cst = arith.constant dense<0.000000e+00> : vector<8x128xf32>
    %34 = tpu.matmul %33, %0, %cst {dimension_numbers = #tpu.dot_dimension_numbers<[1], [0], [0], [1], [0, 0, 1, 1], [], []>} : vector<8x8xf32>, vector<8x128xf32>, vector<8x128xf32> -> vector<8x128xf32>
    %35 = vector.broadcast %32 : vector<8x1xf32> to vector<8x128xf32>
    %36 = arith.addf %34, %35 : vector<8x128xf32>
    %37 = arith.addf %36, %0 : vector<8x128xf32>
    %38 = vector.extract_strided_slice %30 {offsets = [0, 10], sizes = [8, 1], strides = [1, 1]} : vector<8x22xf32> to vector<8x1xf32>
    %39 = vector.extract_strided_slice %30 {offsets = [0, 11], sizes = [8, 1], strides = [1, 1]} : vector<8x22xf32> to vector<8x1xf32>
    %40 = vector.extract_strided_slice %30 {offsets = [0, 12], sizes = [8, 1], strides = [1, 1]} : vector<8x22xf32> to vector<8x1xf32>
    %41 = vector.extract_strided_slice %30 {offsets = [0, 1], sizes = [8, 1], strides = [1, 1]} : vector<8x22xf32> to vector<8x1xf32>
    %c1_i32_11 = arith.constant 1 : i32
    %42 = tpu.dynamic_rotate %37 by %c1_i32_11 dim 1 : vector<8x128xf32>, i32 -> vector<8x128xf32>
    %43 = vector.broadcast %21 : vector<1x128xf32> to vector<8x128xf32>
    %44 = arith.mulf %42, %43 : vector<8x128xf32>
    %c127_i32 = arith.constant 127 : i32
    %45 = tpu.dynamic_rotate %37 by %c127_i32 dim 1 : vector<8x128xf32>, i32 -> vector<8x128xf32>
    %46 = vector.broadcast %25 : vector<1x128xf32> to vector<8x128xf32>
    %47 = arith.mulf %45, %46 : vector<8x128xf32>
    %48 = vector.broadcast %38 : vector<8x1xf32> to vector<8x128xf32>
    %49 = arith.mulf %48, %44 : vector<8x128xf32>
    %50 = vector.broadcast %39 : vector<8x1xf32> to vector<8x128xf32>
    %51 = arith.mulf %50, %37 : vector<8x128xf32>
    %52 = arith.addf %49, %51 : vector<8x128xf32>
    %53 = vector.broadcast %40 : vector<8x1xf32> to vector<8x128xf32>
    %54 = arith.mulf %53, %47 : vector<8x128xf32>
    %55 = arith.addf %52, %54 : vector<8x128xf32>
    %56 = vector.broadcast %41 : vector<8x1xf32> to vector<8x128xf32>
    %57 = arith.addf %55, %56 : vector<8x128xf32>
    %cst_12 = arith.constant 5.000000e-01 : f32
    %58 = vector.broadcast %cst_12 : f32 to vector<8x128xf32>
    %59 = arith.mulf %58, %57 : vector<8x128xf32>
    %cst_13 = arith.constant 0.707106769 : f32
    %60 = vector.broadcast %cst_13 : f32 to vector<8x128xf32>
    %61 = arith.mulf %57, %60 : vector<8x128xf32>
    %cst_14 = arith.constant 0.000000e+00 : f32
    %62 = vector.broadcast %cst_14 : f32 to vector<8x128xf32>
    %63 = arith.cmpf oge, %61, %62 : vector<8x128xf32>
    %cst_15 = arith.constant 1.000000e+00 : f32
    %cst_16 = arith.constant -1.000000e+00 : f32
    %64 = vector.broadcast %cst_15 : f32 to vector<8x128xf32>
    %65 = vector.broadcast %cst_16 : f32 to vector<8x128xf32>
    %66 = arith.select %63, %64, %65 : vector<8x128xi1>, vector<8x128xf32>
    %67 = math.absf %61 : vector<8x128xf32>
    %cst_17 = arith.constant 0.327591091 : f32
    %68 = vector.broadcast %cst_17 : f32 to vector<8x128xf32>
    %69 = arith.mulf %68, %67 : vector<8x128xf32>
    %cst_18 = arith.constant 1.000000e+00 : f32
    %70 = vector.broadcast %cst_18 : f32 to vector<8x128xf32>
    %71 = arith.addf %70, %69 : vector<8x128xf32>
    %72 = tpu.reciprocal %71 {approx = true} : vector<8x128xf32> -> vector<8x128xf32>
    %73 = arith.mulf %71, %72 : vector<8x128xf32>
    %cst_19 = arith.constant 2.000000e+00 : f32
    %74 = vector.broadcast %cst_19 : f32 to vector<8x128xf32>
    %75 = arith.subf %74, %73 : vector<8x128xf32>
    %76 = arith.mulf %72, %75 : vector<8x128xf32>
    %cst_20 = arith.constant 1.06140542 : f32
    %77 = vector.broadcast %cst_20 : f32 to vector<8x128xf32>
    %78 = arith.mulf %76, %77 : vector<8x128xf32>
    %cst_21 = arith.constant -1.45315206 : f32
    %79 = vector.broadcast %cst_21 : f32 to vector<8x128xf32>
    %80 = arith.addf %79, %78 : vector<8x128xf32>
    %81 = arith.mulf %76, %80 : vector<8x128xf32>
    %cst_22 = arith.constant 1.42141378 : f32
    %82 = vector.broadcast %cst_22 : f32 to vector<8x128xf32>
    %83 = arith.addf %82, %81 : vector<8x128xf32>
    %84 = arith.mulf %76, %83 : vector<8x128xf32>
    %cst_23 = arith.constant -0.284496725 : f32
    %85 = vector.broadcast %cst_23 : f32 to vector<8x128xf32>
    %86 = arith.addf %85, %84 : vector<8x128xf32>
    %87 = arith.mulf %76, %86 : vector<8x128xf32>
    %cst_24 = arith.constant 0.254829586 : f32
    %88 = vector.broadcast %cst_24 : f32 to vector<8x128xf32>
    %89 = arith.addf %88, %87 : vector<8x128xf32>
    %90 = arith.mulf %76, %89 : vector<8x128xf32>
    %cst_25 = arith.constant 0.000000e+00 : f32
    %91 = vector.broadcast %cst_25 : f32 to vector<8x128xf32>
    %92 = arith.subf %91, %67 : vector<8x128xf32>
    %93 = arith.mulf %92, %67 : vector<8x128xf32>
    %94 = math.exp %93 : vector<8x128xf32>
    %95 = arith.mulf %90, %94 : vector<8x128xf32>
    %cst_26 = arith.constant 1.000000e+00 : f32
    %96 = vector.broadcast %cst_26 : f32 to vector<8x128xf32>
    %97 = arith.subf %96, %95 : vector<8x128xf32>
    %98 = arith.mulf %66, %97 : vector<8x128xf32>
    %cst_27 = arith.constant 1.000000e+00 : f32
    %99 = vector.broadcast %cst_27 : f32 to vector<8x128xf32>
    %100 = arith.addf %99, %98 : vector<8x128xf32>
    %101 = arith.mulf %59, %100 : vector<8x128xf32>
    %102 = vector.extract_strided_slice %30 {offsets = [0, 4], sizes = [8, 1], strides = [1, 1]} : vector<8x22xf32> to vector<8x1xf32>
    %103 = vector.extract_strided_slice %30 {offsets = [0, 7], sizes = [8, 1], strides = [1, 1]} : vector<8x22xf32> to vector<8x1xf32>
    %104 = vector.broadcast %29 : vector<1x128xf32> to vector<8x128xf32>
    %105 = arith.mulf %101, %104 : vector<8x128xf32>
    %cst_28 = arith.constant dense<0.000000e+00> : vector<8xf32>
    %106 = vector.multi_reduction <add>, %105, %cst_28 [1] : vector<8x128xf32> to vector<8xf32>
    %107 = vector.shape_cast %106 : vector<8xf32> to vector<8x1xf32>
    %cst_29 = arith.constant 3.125000e-02 : f32
    %108 = vector.broadcast %cst_29 : f32 to vector<8x1xf32>
    %109 = arith.mulf %107, %108 : vector<8x1xf32>
    %110 = arith.mulf %105, %105 : vector<8x128xf32>
    %cst_30 = arith.constant dense<0.000000e+00> : vector<8xf32>
    %111 = vector.multi_reduction <add>, %110, %cst_30 [1] : vector<8x128xf32> to vector<8xf32>
    %112 = vector.shape_cast %111 : vector<8xf32> to vector<8x1xf32>
    %cst_31 = arith.constant 3.125000e-02 : f32
    %113 = vector.broadcast %cst_31 : f32 to vector<8x1xf32>
    %114 = arith.mulf %112, %113 : vector<8x1xf32>
    %115 = arith.mulf %109, %109 : vector<8x1xf32>
    %116 = arith.subf %114, %115 : vector<8x1xf32>
    %cst_32 = arith.constant 0.000000e+00 : f32
    %117 = vector.broadcast %cst_32 : f32 to vector<8x1xf32>
    %118 = arith.maximumf %116, %117 : vector<8x1xf32>
    %cst_33 = arith.constant 9.99999974E-6 : f32
    %119 = vector.broadcast %cst_33 : f32 to vector<8x1xf32>
    %120 = arith.addf %118, %119 : vector<8x1xf32>
    %121 = math.rsqrt %120 : vector<8x1xf32>
    %122 = arith.mulf %102, %121 : vector<8x1xf32>
    %123 = arith.mulf %109, %122 : vector<8x1xf32>
    %124 = arith.subf %103, %123 : vector<8x1xf32>
    %125 = vector.broadcast %122 : vector<8x1xf32> to vector<8x128xf32>
    %126 = arith.mulf %101, %125 : vector<8x128xf32>
    %127 = vector.broadcast %124 : vector<8x1xf32> to vector<8x128xf32>
    %128 = arith.addf %126, %127 : vector<8x128xf32>
    %129 = vector.extract_strided_slice %30 {offsets = [0, 13], sizes = [8, 1], strides = [1, 1]} : vector<8x22xf32> to vector<8x1xf32>
    %130 = vector.extract_strided_slice %30 {offsets = [0, 14], sizes = [8, 1], strides = [1, 1]} : vector<8x22xf32> to vector<8x1xf32>
    %131 = vector.extract_strided_slice %30 {offsets = [0, 15], sizes = [8, 1], strides = [1, 1]} : vector<8x22xf32> to vector<8x1xf32>
    %132 = vector.extract_strided_slice %30 {offsets = [0, 2], sizes = [8, 1], strides = [1, 1]} : vector<8x22xf32> to vector<8x1xf32>
    %c1_i32_34 = arith.constant 1 : i32
    %133 = tpu.dynamic_rotate %128 by %c1_i32_34 dim 1 : vector<8x128xf32>, i32 -> vector<8x128xf32>
    %134 = vector.broadcast %21 : vector<1x128xf32> to vector<8x128xf32>
    %135 = arith.mulf %133, %134 : vector<8x128xf32>
    %c127_i32_35 = arith.constant 127 : i32
    %136 = tpu.dynamic_rotate %128 by %c127_i32_35 dim 1 : vector<8x128xf32>, i32 -> vector<8x128xf32>
    %137 = vector.broadcast %25 : vector<1x128xf32> to vector<8x128xf32>
    %138 = arith.mulf %136, %137 : vector<8x128xf32>
    %139 = vector.broadcast %129 : vector<8x1xf32> to vector<8x128xf32>
    %140 = arith.mulf %139, %135 : vector<8x128xf32>
    %141 = vector.broadcast %130 : vector<8x1xf32> to vector<8x128xf32>
    %142 = arith.mulf %141, %128 : vector<8x128xf32>
    %143 = arith.addf %140, %142 : vector<8x128xf32>
    %144 = vector.broadcast %131 : vector<8x1xf32> to vector<8x128xf32>
    %145 = arith.mulf %144, %138 : vector<8x128xf32>
    %146 = arith.addf %143, %145 : vector<8x128xf32>
    %147 = vector.broadcast %132 : vector<8x1xf32> to vector<8x128xf32>
    %148 = arith.addf %146, %147 : vector<8x128xf32>
    %cst_36 = arith.constant 5.000000e-01 : f32
    %149 = vector.broadcast %cst_36 : f32 to vector<8x128xf32>
    %150 = arith.mulf %149, %148 : vector<8x128xf32>
    %cst_37 = arith.constant 0.707106769 : f32
    %151 = vector.broadcast %cst_37 : f32 to vector<8x128xf32>
    %152 = arith.mulf %148, %151 : vector<8x128xf32>
    %cst_38 = arith.constant 0.000000e+00 : f32
    %153 = vector.broadcast %cst_38 : f32 to vector<8x128xf32>
    %154 = arith.cmpf oge, %152, %153 : vector<8x128xf32>
    %cst_39 = arith.constant 1.000000e+00 : f32
    %cst_40 = arith.constant -1.000000e+00 : f32
    %155 = vector.broadcast %cst_39 : f32 to vector<8x128xf32>
    %156 = vector.broadcast %cst_40 : f32 to vector<8x128xf32>
    %157 = arith.select %154, %155, %156 : vector<8x128xi1>, vector<8x128xf32>
    %158 = math.absf %152 : vector<8x128xf32>
    %cst_41 = arith.constant 0.327591091 : f32
    %159 = vector.broadcast %cst_41 : f32 to vector<8x128xf32>
    %160 = arith.mulf %159, %158 : vector<8x128xf32>
    %cst_42 = arith.constant 1.000000e+00 : f32
    %161 = vector.broadcast %cst_42 : f32 to vector<8x128xf32>
    %162 = arith.addf %161, %160 : vector<8x128xf32>
    %163 = tpu.reciprocal %162 {approx = true} : vector<8x128xf32> -> vector<8x128xf32>
    %164 = arith.mulf %162, %163 : vector<8x128xf32>
    %cst_43 = arith.constant 2.000000e+00 : f32
    %165 = vector.broadcast %cst_43 : f32 to vector<8x128xf32>
    %166 = arith.subf %165, %164 : vector<8x128xf32>
    %167 = arith.mulf %163, %166 : vector<8x128xf32>
    %cst_44 = arith.constant 1.06140542 : f32
    %168 = vector.broadcast %cst_44 : f32 to vector<8x128xf32>
    %169 = arith.mulf %167, %168 : vector<8x128xf32>
    %cst_45 = arith.constant -1.45315206 : f32
    %170 = vector.broadcast %cst_45 : f32 to vector<8x128xf32>
    %171 = arith.addf %170, %169 : vector<8x128xf32>
    %172 = arith.mulf %167, %171 : vector<8x128xf32>
    %cst_46 = arith.constant 1.42141378 : f32
    %173 = vector.broadcast %cst_46 : f32 to vector<8x128xf32>
    %174 = arith.addf %173, %172 : vector<8x128xf32>
    %175 = arith.mulf %167, %174 : vector<8x128xf32>
    %cst_47 = arith.constant -0.284496725 : f32
    %176 = vector.broadcast %cst_47 : f32 to vector<8x128xf32>
    %177 = arith.addf %176, %175 : vector<8x128xf32>
    %178 = arith.mulf %167, %177 : vector<8x128xf32>
    %cst_48 = arith.constant 0.254829586 : f32
    %179 = vector.broadcast %cst_48 : f32 to vector<8x128xf32>
    %180 = arith.addf %179, %178 : vector<8x128xf32>
    %181 = arith.mulf %167, %180 : vector<8x128xf32>
    %cst_49 = arith.constant 0.000000e+00 : f32
    %182 = vector.broadcast %cst_49 : f32 to vector<8x128xf32>
    %183 = arith.subf %182, %158 : vector<8x128xf32>
    %184 = arith.mulf %183, %158 : vector<8x128xf32>
    %185 = math.exp %184 : vector<8x128xf32>
    %186 = arith.mulf %181, %185 : vector<8x128xf32>
    %cst_50 = arith.constant 1.000000e+00 : f32
    %187 = vector.broadcast %cst_50 : f32 to vector<8x128xf32>
    %188 = arith.subf %187, %186 : vector<8x128xf32>
    %189 = arith.mulf %157, %188 : vector<8x128xf32>
    %cst_51 = arith.constant 1.000000e+00 : f32
    %190 = vector.broadcast %cst_51 : f32 to vector<8x128xf32>
    %191 = arith.addf %190, %189 : vector<8x128xf32>
    %192 = arith.mulf %150, %191 : vector<8x128xf32>
    %193 = vector.extract_strided_slice %30 {offsets = [0, 5], sizes = [8, 1], strides = [1, 1]} : vector<8x22xf32> to vector<8x1xf32>
    %194 = vector.extract_strided_slice %30 {offsets = [0, 8], sizes = [8, 1], strides = [1, 1]} : vector<8x22xf32> to vector<8x1xf32>
    %195 = vector.broadcast %29 : vector<1x128xf32> to vector<8x128xf32>
    %196 = arith.mulf %192, %195 : vector<8x128xf32>
    %cst_52 = arith.constant dense<0.000000e+00> : vector<8xf32>
    %197 = vector.multi_reduction <add>, %196, %cst_52 [1] : vector<8x128xf32> to vector<8xf32>
    %198 = vector.shape_cast %197 : vector<8xf32> to vector<8x1xf32>
    %cst_53 = arith.constant 3.125000e-02 : f32
    %199 = vector.broadcast %cst_53 : f32 to vector<8x1xf32>
    %200 = arith.mulf %198, %199 : vector<8x1xf32>
    %201 = arith.mulf %196, %196 : vector<8x128xf32>
    %cst_54 = arith.constant dense<0.000000e+00> : vector<8xf32>
    %202 = vector.multi_reduction <add>, %201, %cst_54 [1] : vector<8x128xf32> to vector<8xf32>
    %203 = vector.shape_cast %202 : vector<8xf32> to vector<8x1xf32>
    %cst_55 = arith.constant 3.125000e-02 : f32
    %204 = vector.broadcast %cst_55 : f32 to vector<8x1xf32>
    %205 = arith.mulf %203, %204 : vector<8x1xf32>
    %206 = arith.mulf %200, %200 : vector<8x1xf32>
    %207 = arith.subf %205, %206 : vector<8x1xf32>
    %cst_56 = arith.constant 0.000000e+00 : f32
    %208 = vector.broadcast %cst_56 : f32 to vector<8x1xf32>
    %209 = arith.maximumf %207, %208 : vector<8x1xf32>
    %cst_57 = arith.constant 9.99999974E-6 : f32
    %210 = vector.broadcast %cst_57 : f32 to vector<8x1xf32>
    %211 = arith.addf %209, %210 : vector<8x1xf32>
    %212 = math.rsqrt %211 : vector<8x1xf32>
    %213 = arith.mulf %193, %212 : vector<8x1xf32>
    %214 = arith.mulf %200, %213 : vector<8x1xf32>
    %215 = arith.subf %194, %214 : vector<8x1xf32>
    %216 = vector.broadcast %213 : vector<8x1xf32> to vector<8x128xf32>
    %217 = arith.mulf %192, %216 : vector<8x128xf32>
    %218 = vector.broadcast %215 : vector<8x1xf32> to vector<8x128xf32>
    %219 = arith.addf %217, %218 : vector<8x128xf32>
    %220 = vector.extract_strided_slice %30 {offsets = [0, 16], sizes = [8, 1], strides = [1, 1]} : vector<8x22xf32> to vector<8x1xf32>
    %221 = vector.extract_strided_slice %30 {offsets = [0, 17], sizes = [8, 1], strides = [1, 1]} : vector<8x22xf32> to vector<8x1xf32>
    %222 = vector.extract_strided_slice %30 {offsets = [0, 18], sizes = [8, 1], strides = [1, 1]} : vector<8x22xf32> to vector<8x1xf32>
    %223 = vector.extract_strided_slice %30 {offsets = [0, 3], sizes = [8, 1], strides = [1, 1]} : vector<8x22xf32> to vector<8x1xf32>
    %c1_i32_58 = arith.constant 1 : i32
    %224 = tpu.dynamic_rotate %219 by %c1_i32_58 dim 1 : vector<8x128xf32>, i32 -> vector<8x128xf32>
    %225 = vector.broadcast %21 : vector<1x128xf32> to vector<8x128xf32>
    %226 = arith.mulf %224, %225 : vector<8x128xf32>
    %c127_i32_59 = arith.constant 127 : i32
    %227 = tpu.dynamic_rotate %219 by %c127_i32_59 dim 1 : vector<8x128xf32>, i32 -> vector<8x128xf32>
    %228 = vector.broadcast %25 : vector<1x128xf32> to vector<8x128xf32>
    %229 = arith.mulf %227, %228 : vector<8x128xf32>
    %230 = vector.broadcast %220 : vector<8x1xf32> to vector<8x128xf32>
    %231 = arith.mulf %230, %226 : vector<8x128xf32>
    %232 = vector.broadcast %221 : vector<8x1xf32> to vector<8x128xf32>
    %233 = arith.mulf %232, %219 : vector<8x128xf32>
    %234 = arith.addf %231, %233 : vector<8x128xf32>
    %235 = vector.broadcast %222 : vector<8x1xf32> to vector<8x128xf32>
    %236 = arith.mulf %235, %229 : vector<8x128xf32>
    %237 = arith.addf %234, %236 : vector<8x128xf32>
    %238 = vector.broadcast %223 : vector<8x1xf32> to vector<8x128xf32>
    %239 = arith.addf %237, %238 : vector<8x128xf32>
    %cst_60 = arith.constant 5.000000e-01 : f32
    %240 = vector.broadcast %cst_60 : f32 to vector<8x128xf32>
    %241 = arith.mulf %240, %239 : vector<8x128xf32>
    %cst_61 = arith.constant 0.707106769 : f32
    %242 = vector.broadcast %cst_61 : f32 to vector<8x128xf32>
    %243 = arith.mulf %239, %242 : vector<8x128xf32>
    %cst_62 = arith.constant 0.000000e+00 : f32
    %244 = vector.broadcast %cst_62 : f32 to vector<8x128xf32>
    %245 = arith.cmpf oge, %243, %244 : vector<8x128xf32>
    %cst_63 = arith.constant 1.000000e+00 : f32
    %cst_64 = arith.constant -1.000000e+00 : f32
    %246 = vector.broadcast %cst_63 : f32 to vector<8x128xf32>
    %247 = vector.broadcast %cst_64 : f32 to vector<8x128xf32>
    %248 = arith.select %245, %246, %247 : vector<8x128xi1>, vector<8x128xf32>
    %249 = math.absf %243 : vector<8x128xf32>
    %cst_65 = arith.constant 0.327591091 : f32
    %250 = vector.broadcast %cst_65 : f32 to vector<8x128xf32>
    %251 = arith.mulf %250, %249 : vector<8x128xf32>
    %cst_66 = arith.constant 1.000000e+00 : f32
    %252 = vector.broadcast %cst_66 : f32 to vector<8x128xf32>
    %253 = arith.addf %252, %251 : vector<8x128xf32>
    %254 = tpu.reciprocal %253 {approx = true} : vector<8x128xf32> -> vector<8x128xf32>
    %255 = arith.mulf %253, %254 : vector<8x128xf32>
    %cst_67 = arith.constant 2.000000e+00 : f32
    %256 = vector.broadcast %cst_67 : f32 to vector<8x128xf32>
    %257 = arith.subf %256, %255 : vector<8x128xf32>
    %258 = arith.mulf %254, %257 : vector<8x128xf32>
    %cst_68 = arith.constant 1.06140542 : f32
    %259 = vector.broadcast %cst_68 : f32 to vector<8x128xf32>
    %260 = arith.mulf %258, %259 : vector<8x128xf32>
    %cst_69 = arith.constant -1.45315206 : f32
    %261 = vector.broadcast %cst_69 : f32 to vector<8x128xf32>
    %262 = arith.addf %261, %260 : vector<8x128xf32>
    %263 = arith.mulf %258, %262 : vector<8x128xf32>
    %cst_70 = arith.constant 1.42141378 : f32
    %264 = vector.broadcast %cst_70 : f32 to vector<8x128xf32>
    %265 = arith.addf %264, %263 : vector<8x128xf32>
    %266 = arith.mulf %258, %265 : vector<8x128xf32>
    %cst_71 = arith.constant -0.284496725 : f32
    %267 = vector.broadcast %cst_71 : f32 to vector<8x128xf32>
    %268 = arith.addf %267, %266 : vector<8x128xf32>
    %269 = arith.mulf %258, %268 : vector<8x128xf32>
    %cst_72 = arith.constant 0.254829586 : f32
    %270 = vector.broadcast %cst_72 : f32 to vector<8x128xf32>
    %271 = arith.addf %270, %269 : vector<8x128xf32>
    %272 = arith.mulf %258, %271 : vector<8x128xf32>
    %cst_73 = arith.constant 0.000000e+00 : f32
    %273 = vector.broadcast %cst_73 : f32 to vector<8x128xf32>
    %274 = arith.subf %273, %249 : vector<8x128xf32>
    %275 = arith.mulf %274, %249 : vector<8x128xf32>
    %276 = math.exp %275 : vector<8x128xf32>
    %277 = arith.mulf %272, %276 : vector<8x128xf32>
    %cst_74 = arith.constant 1.000000e+00 : f32
    %278 = vector.broadcast %cst_74 : f32 to vector<8x128xf32>
    %279 = arith.subf %278, %277 : vector<8x128xf32>
    %280 = arith.mulf %248, %279 : vector<8x128xf32>
    %cst_75 = arith.constant 1.000000e+00 : f32
    %281 = vector.broadcast %cst_75 : f32 to vector<8x128xf32>
    %282 = arith.addf %281, %280 : vector<8x128xf32>
    %283 = arith.mulf %241, %282 : vector<8x128xf32>
    %284 = vector.extract_strided_slice %30 {offsets = [0, 6], sizes = [8, 1], strides = [1, 1]} : vector<8x22xf32> to vector<8x1xf32>
    %285 = vector.extract_strided_slice %30 {offsets = [0, 9], sizes = [8, 1], strides = [1, 1]} : vector<8x22xf32> to vector<8x1xf32>
    %286 = vector.broadcast %29 : vector<1x128xf32> to vector<8x128xf32>
    %287 = arith.mulf %283, %286 : vector<8x128xf32>
    %cst_76 = arith.constant dense<0.000000e+00> : vector<8xf32>
    %288 = vector.multi_reduction <add>, %287, %cst_76 [1] : vector<8x128xf32> to vector<8xf32>
    %289 = vector.shape_cast %288 : vector<8xf32> to vector<8x1xf32>
    %cst_77 = arith.constant 3.125000e-02 : f32
    %290 = vector.broadcast %cst_77 : f32 to vector<8x1xf32>
    %291 = arith.mulf %289, %290 : vector<8x1xf32>
    %292 = arith.mulf %287, %287 : vector<8x128xf32>
    %cst_78 = arith.constant dense<0.000000e+00> : vector<8xf32>
    %293 = vector.multi_reduction <add>, %292, %cst_78 [1] : vector<8x128xf32> to vector<8xf32>
    %294 = vector.shape_cast %293 : vector<8xf32> to vector<8x1xf32>
    %cst_79 = arith.constant 3.125000e-02 : f32
    %295 = vector.broadcast %cst_79 : f32 to vector<8x1xf32>
    %296 = arith.mulf %294, %295 : vector<8x1xf32>
    %297 = arith.mulf %291, %291 : vector<8x1xf32>
    %298 = arith.subf %296, %297 : vector<8x1xf32>
    %cst_80 = arith.constant 0.000000e+00 : f32
    %299 = vector.broadcast %cst_80 : f32 to vector<8x1xf32>
    %300 = arith.maximumf %298, %299 : vector<8x1xf32>
    %cst_81 = arith.constant 9.99999974E-6 : f32
    %301 = vector.broadcast %cst_81 : f32 to vector<8x1xf32>
    %302 = arith.addf %300, %301 : vector<8x1xf32>
    %303 = math.rsqrt %302 : vector<8x1xf32>
    %304 = arith.mulf %284, %303 : vector<8x1xf32>
    %305 = arith.mulf %291, %304 : vector<8x1xf32>
    %306 = arith.subf %285, %305 : vector<8x1xf32>
    %307 = vector.broadcast %304 : vector<8x1xf32> to vector<8x128xf32>
    %308 = arith.mulf %283, %307 : vector<8x128xf32>
    %309 = vector.broadcast %306 : vector<8x1xf32> to vector<8x128xf32>
    %310 = arith.addf %308, %309 : vector<8x128xf32>
    %311 = vector.extract_strided_slice %31 {offsets = [0, 0], sizes = [28, 1], strides = [1, 1]} : vector<28x9xf32> to vector<28x1xf32>
    %c0_82 = arith.constant 0 : index
    %c0_83 = arith.constant 0 : index
    %312 = vector.load %arg2[%c0_82, %c0_83] : memref<28x8xf32, #tpu.memory_space<vmem>>, vector<28x8xf32>
    %cst_84 = arith.constant dense<0.000000e+00> : vector<28x128xf32>
    %313 = tpu.matmul %312, %310, %cst_84 {dimension_numbers = #tpu.dot_dimension_numbers<[1], [0], [0], [1], [0, 0, 1, 1], [], []>} : vector<28x8xf32>, vector<8x128xf32>, vector<28x128xf32> -> vector<28x128xf32>
    %314 = vector.broadcast %311 : vector<28x1xf32> to vector<28x128xf32>
    %315 = arith.addf %313, %314 : vector<28x128xf32>
    %316 = vector.extract_strided_slice %31 {offsets = [0, 1], sizes = [28, 1], strides = [1, 1]} : vector<28x9xf32> to vector<28x1xf32>
    %317 = vector.extract_strided_slice %31 {offsets = [0, 2], sizes = [28, 1], strides = [1, 1]} : vector<28x9xf32> to vector<28x1xf32>
    %318 = vector.broadcast %29 : vector<1x128xf32> to vector<28x128xf32>
    %319 = arith.mulf %315, %318 : vector<28x128xf32>
    %cst_85 = arith.constant dense<0.000000e+00> : vector<28xf32>
    %320 = vector.multi_reduction <add>, %319, %cst_85 [1] : vector<28x128xf32> to vector<28xf32>
    %321 = vector.shape_cast %320 : vector<28xf32> to vector<28x1xf32>
    %cst_86 = arith.constant 3.125000e-02 : f32
    %322 = vector.broadcast %cst_86 : f32 to vector<28x1xf32>
    %323 = arith.mulf %321, %322 : vector<28x1xf32>
    %324 = arith.mulf %319, %319 : vector<28x128xf32>
    %cst_87 = arith.constant dense<0.000000e+00> : vector<28xf32>
    %325 = vector.multi_reduction <add>, %324, %cst_87 [1] : vector<28x128xf32> to vector<28xf32>
    %326 = vector.shape_cast %325 : vector<28xf32> to vector<28x1xf32>
    %cst_88 = arith.constant 3.125000e-02 : f32
    %327 = vector.broadcast %cst_88 : f32 to vector<28x1xf32>
    %328 = arith.mulf %326, %327 : vector<28x1xf32>
    %329 = arith.mulf %323, %323 : vector<28x1xf32>
    %330 = arith.subf %328, %329 : vector<28x1xf32>
    %cst_89 = arith.constant 0.000000e+00 : f32
    %331 = vector.broadcast %cst_89 : f32 to vector<28x1xf32>
    %332 = arith.maximumf %330, %331 : vector<28x1xf32>
    %cst_90 = arith.constant 9.99999974E-6 : f32
    %333 = vector.broadcast %cst_90 : f32 to vector<28x1xf32>
    %334 = arith.addf %332, %333 : vector<28x1xf32>
    %335 = math.rsqrt %334 : vector<28x1xf32>
    %336 = arith.mulf %316, %335 : vector<28x1xf32>
    %337 = arith.mulf %323, %336 : vector<28x1xf32>
    %338 = arith.subf %317, %337 : vector<28x1xf32>
    %339 = vector.broadcast %336 : vector<28x1xf32> to vector<28x128xf32>
    %340 = arith.mulf %315, %339 : vector<28x128xf32>
    %341 = vector.broadcast %338 : vector<28x1xf32> to vector<28x128xf32>
    %342 = arith.addf %340, %341 : vector<28x128xf32>
    %cst_91 = arith.constant 5.000000e-01 : f32
    %343 = vector.broadcast %cst_91 : f32 to vector<28x128xf32>
    %344 = arith.mulf %343, %342 : vector<28x128xf32>
    %cst_92 = arith.constant 0.707106769 : f32
    %345 = vector.broadcast %cst_92 : f32 to vector<28x128xf32>
    %346 = arith.mulf %342, %345 : vector<28x128xf32>
    %cst_93 = arith.constant 0.000000e+00 : f32
    %347 = vector.broadcast %cst_93 : f32 to vector<28x128xf32>
    %348 = arith.cmpf oge, %346, %347 : vector<28x128xf32>
    %cst_94 = arith.constant 1.000000e+00 : f32
    %cst_95 = arith.constant -1.000000e+00 : f32
    %349 = vector.broadcast %cst_94 : f32 to vector<28x128xf32>
    %350 = vector.broadcast %cst_95 : f32 to vector<28x128xf32>
    %351 = arith.select %348, %349, %350 : vector<28x128xi1>, vector<28x128xf32>
    %352 = math.absf %346 : vector<28x128xf32>
    %cst_96 = arith.constant 0.327591091 : f32
    %353 = vector.broadcast %cst_96 : f32 to vector<28x128xf32>
    %354 = arith.mulf %353, %352 : vector<28x128xf32>
    %cst_97 = arith.constant 1.000000e+00 : f32
    %355 = vector.broadcast %cst_97 : f32 to vector<28x128xf32>
    %356 = arith.addf %355, %354 : vector<28x128xf32>
    %357 = tpu.reciprocal %356 {approx = true} : vector<28x128xf32> -> vector<28x128xf32>
    %358 = arith.mulf %356, %357 : vector<28x128xf32>
    %cst_98 = arith.constant 2.000000e+00 : f32
    %359 = vector.broadcast %cst_98 : f32 to vector<28x128xf32>
    %360 = arith.subf %359, %358 : vector<28x128xf32>
    %361 = arith.mulf %357, %360 : vector<28x128xf32>
    %cst_99 = arith.constant 1.06140542 : f32
    %362 = vector.broadcast %cst_99 : f32 to vector<28x128xf32>
    %363 = arith.mulf %361, %362 : vector<28x128xf32>
    %cst_100 = arith.constant -1.45315206 : f32
    %364 = vector.broadcast %cst_100 : f32 to vector<28x128xf32>
    %365 = arith.addf %364, %363 : vector<28x128xf32>
    %366 = arith.mulf %361, %365 : vector<28x128xf32>
    %cst_101 = arith.constant 1.42141378 : f32
    %367 = vector.broadcast %cst_101 : f32 to vector<28x128xf32>
    %368 = arith.addf %367, %366 : vector<28x128xf32>
    %369 = arith.mulf %361, %368 : vector<28x128xf32>
    %cst_102 = arith.constant -0.284496725 : f32
    %370 = vector.broadcast %cst_102 : f32 to vector<28x128xf32>
    %371 = arith.addf %370, %369 : vector<28x128xf32>
    %372 = arith.mulf %361, %371 : vector<28x128xf32>
    %cst_103 = arith.constant 0.254829586 : f32
    %373 = vector.broadcast %cst_103 : f32 to vector<28x128xf32>
    %374 = arith.addf %373, %372 : vector<28x128xf32>
    %375 = arith.mulf %361, %374 : vector<28x128xf32>
    %cst_104 = arith.constant 0.000000e+00 : f32
    %376 = vector.broadcast %cst_104 : f32 to vector<28x128xf32>
    %377 = arith.subf %376, %352 : vector<28x128xf32>
    %378 = arith.mulf %377, %352 : vector<28x128xf32>
    %379 = math.exp %378 : vector<28x128xf32>
    %380 = arith.mulf %375, %379 : vector<28x128xf32>
    %cst_105 = arith.constant 1.000000e+00 : f32
    %381 = vector.broadcast %cst_105 : f32 to vector<28x128xf32>
    %382 = arith.subf %381, %380 : vector<28x128xf32>
    %383 = arith.mulf %351, %382 : vector<28x128xf32>
    %cst_106 = arith.constant 1.000000e+00 : f32
    %384 = vector.broadcast %cst_106 : f32 to vector<28x128xf32>
    %385 = arith.addf %384, %383 : vector<28x128xf32>
    %386 = arith.mulf %344, %385 : vector<28x128xf32>
    %387 = vector.extract_strided_slice %31 {offsets = [0, 3], sizes = [28, 1], strides = [1, 1]} : vector<28x9xf32> to vector<28x1xf32>
    %388 = vector.extract_strided_slice %31 {offsets = [0, 4], sizes = [28, 1], strides = [1, 1]} : vector<28x9xf32> to vector<28x1xf32>
    %389 = vector.extract_strided_slice %31 {offsets = [0, 5], sizes = [28, 1], strides = [1, 1]} : vector<28x9xf32> to vector<28x1xf32>
    %390 = vector.extract_strided_slice %31 {offsets = [0, 6], sizes = [28, 1], strides = [1, 1]} : vector<28x9xf32> to vector<28x1xf32>
    %c1_i32_107 = arith.constant 1 : i32
    %391 = tpu.dynamic_rotate %386 by %c1_i32_107 dim 1 : vector<28x128xf32>, i32 -> vector<28x128xf32>
    %392 = vector.broadcast %21 : vector<1x128xf32> to vector<28x128xf32>
    %393 = arith.mulf %391, %392 : vector<28x128xf32>
    %c127_i32_108 = arith.constant 127 : i32
    %394 = tpu.dynamic_rotate %386 by %c127_i32_108 dim 1 : vector<28x128xf32>, i32 -> vector<28x128xf32>
    %395 = vector.broadcast %25 : vector<1x128xf32> to vector<28x128xf32>
    %396 = arith.mulf %394, %395 : vector<28x128xf32>
    %397 = vector.broadcast %387 : vector<28x1xf32> to vector<28x128xf32>
    %398 = arith.mulf %397, %393 : vector<28x128xf32>
    %399 = vector.broadcast %388 : vector<28x1xf32> to vector<28x128xf32>
    %400 = arith.mulf %399, %386 : vector<28x128xf32>
    %401 = arith.addf %398, %400 : vector<28x128xf32>
    %402 = vector.broadcast %389 : vector<28x1xf32> to vector<28x128xf32>
    %403 = arith.mulf %402, %396 : vector<28x128xf32>
    %404 = arith.addf %401, %403 : vector<28x128xf32>
    %405 = vector.broadcast %390 : vector<28x1xf32> to vector<28x128xf32>
    %406 = arith.addf %404, %405 : vector<28x128xf32>
    %407 = vector.extract_strided_slice %31 {offsets = [0, 7], sizes = [28, 1], strides = [1, 1]} : vector<28x9xf32> to vector<28x1xf32>
    %408 = vector.extract_strided_slice %31 {offsets = [0, 8], sizes = [28, 1], strides = [1, 1]} : vector<28x9xf32> to vector<28x1xf32>
    %409 = vector.broadcast %29 : vector<1x128xf32> to vector<28x128xf32>
    %410 = arith.mulf %406, %409 : vector<28x128xf32>
    %cst_109 = arith.constant dense<0.000000e+00> : vector<28xf32>
    %411 = vector.multi_reduction <add>, %410, %cst_109 [1] : vector<28x128xf32> to vector<28xf32>
    %412 = vector.shape_cast %411 : vector<28xf32> to vector<28x1xf32>
    %cst_110 = arith.constant 3.125000e-02 : f32
    %413 = vector.broadcast %cst_110 : f32 to vector<28x1xf32>
    %414 = arith.mulf %412, %413 : vector<28x1xf32>
    %415 = arith.mulf %410, %410 : vector<28x128xf32>
    %cst_111 = arith.constant dense<0.000000e+00> : vector<28xf32>
    %416 = vector.multi_reduction <add>, %415, %cst_111 [1] : vector<28x128xf32> to vector<28xf32>
    %417 = vector.shape_cast %416 : vector<28xf32> to vector<28x1xf32>
    %cst_112 = arith.constant 3.125000e-02 : f32
    %418 = vector.broadcast %cst_112 : f32 to vector<28x1xf32>
    %419 = arith.mulf %417, %418 : vector<28x1xf32>
    %420 = arith.mulf %414, %414 : vector<28x1xf32>
    %421 = arith.subf %419, %420 : vector<28x1xf32>
    %cst_113 = arith.constant 0.000000e+00 : f32
    %422 = vector.broadcast %cst_113 : f32 to vector<28x1xf32>
    %423 = arith.maximumf %421, %422 : vector<28x1xf32>
    %cst_114 = arith.constant 9.99999974E-6 : f32
    %424 = vector.broadcast %cst_114 : f32 to vector<28x1xf32>
    %425 = arith.addf %423, %424 : vector<28x1xf32>
    %426 = math.rsqrt %425 : vector<28x1xf32>
    %427 = arith.mulf %407, %426 : vector<28x1xf32>
    %428 = arith.mulf %414, %427 : vector<28x1xf32>
    %429 = arith.subf %408, %428 : vector<28x1xf32>
    %430 = vector.broadcast %427 : vector<28x1xf32> to vector<28x128xf32>
    %431 = arith.mulf %406, %430 : vector<28x128xf32>
    %432 = vector.broadcast %429 : vector<28x1xf32> to vector<28x128xf32>
    %433 = arith.addf %431, %432 : vector<28x128xf32>
    %cst_115 = arith.constant 5.000000e-01 : f32
    %434 = vector.broadcast %cst_115 : f32 to vector<28x128xf32>
    %435 = arith.mulf %434, %433 : vector<28x128xf32>
    %cst_116 = arith.constant 0.707106769 : f32
    %436 = vector.broadcast %cst_116 : f32 to vector<28x128xf32>
    %437 = arith.mulf %433, %436 : vector<28x128xf32>
    %cst_117 = arith.constant 0.000000e+00 : f32
    %438 = vector.broadcast %cst_117 : f32 to vector<28x128xf32>
    %439 = arith.cmpf oge, %437, %438 : vector<28x128xf32>
    %cst_118 = arith.constant 1.000000e+00 : f32
    %cst_119 = arith.constant -1.000000e+00 : f32
    %440 = vector.broadcast %cst_118 : f32 to vector<28x128xf32>
    %441 = vector.broadcast %cst_119 : f32 to vector<28x128xf32>
    %442 = arith.select %439, %440, %441 : vector<28x128xi1>, vector<28x128xf32>
    %443 = math.absf %437 : vector<28x128xf32>
    %cst_120 = arith.constant 0.327591091 : f32
    %444 = vector.broadcast %cst_120 : f32 to vector<28x128xf32>
    %445 = arith.mulf %444, %443 : vector<28x128xf32>
    %cst_121 = arith.constant 1.000000e+00 : f32
    %446 = vector.broadcast %cst_121 : f32 to vector<28x128xf32>
    %447 = arith.addf %446, %445 : vector<28x128xf32>
    %448 = tpu.reciprocal %447 {approx = true} : vector<28x128xf32> -> vector<28x128xf32>
    %449 = arith.mulf %447, %448 : vector<28x128xf32>
    %cst_122 = arith.constant 2.000000e+00 : f32
    %450 = vector.broadcast %cst_122 : f32 to vector<28x128xf32>
    %451 = arith.subf %450, %449 : vector<28x128xf32>
    %452 = arith.mulf %448, %451 : vector<28x128xf32>
    %cst_123 = arith.constant 1.06140542 : f32
    %453 = vector.broadcast %cst_123 : f32 to vector<28x128xf32>
    %454 = arith.mulf %452, %453 : vector<28x128xf32>
    %cst_124 = arith.constant -1.45315206 : f32
    %455 = vector.broadcast %cst_124 : f32 to vector<28x128xf32>
    %456 = arith.addf %455, %454 : vector<28x128xf32>
    %457 = arith.mulf %452, %456 : vector<28x128xf32>
    %cst_125 = arith.constant 1.42141378 : f32
    %458 = vector.broadcast %cst_125 : f32 to vector<28x128xf32>
    %459 = arith.addf %458, %457 : vector<28x128xf32>
    %460 = arith.mulf %452, %459 : vector<28x128xf32>
    %cst_126 = arith.constant -0.284496725 : f32
    %461 = vector.broadcast %cst_126 : f32 to vector<28x128xf32>
    %462 = arith.addf %461, %460 : vector<28x128xf32>
    %463 = arith.mulf %452, %462 : vector<28x128xf32>
    %cst_127 = arith.constant 0.254829586 : f32
    %464 = vector.broadcast %cst_127 : f32 to vector<28x128xf32>
    %465 = arith.addf %464, %463 : vector<28x128xf32>
    %466 = arith.mulf %452, %465 : vector<28x128xf32>
    %cst_128 = arith.constant 0.000000e+00 : f32
    %467 = vector.broadcast %cst_128 : f32 to vector<28x128xf32>
    %468 = arith.subf %467, %443 : vector<28x128xf32>
    %469 = arith.mulf %468, %443 : vector<28x128xf32>
    %470 = math.exp %469 : vector<28x128xf32>
    %471 = arith.mulf %466, %470 : vector<28x128xf32>
    %cst_129 = arith.constant 1.000000e+00 : f32
    %472 = vector.broadcast %cst_129 : f32 to vector<28x128xf32>
    %473 = arith.subf %472, %471 : vector<28x128xf32>
    %474 = arith.mulf %442, %473 : vector<28x128xf32>
    %cst_130 = arith.constant 1.000000e+00 : f32
    %475 = vector.broadcast %cst_130 : f32 to vector<28x128xf32>
    %476 = arith.addf %475, %474 : vector<28x128xf32>
    %477 = arith.mulf %435, %476 : vector<28x128xf32>
    %478 = vector.extract_strided_slice %30 {offsets = [0, 19], sizes = [8, 1], strides = [1, 1]} : vector<8x22xf32> to vector<8x1xf32>
    %c0_131 = arith.constant 0 : index
    %c0_132 = arith.constant 0 : index
    %479 = vector.load %arg3[%c0_131, %c0_132] : memref<8x28xf32, #tpu.memory_space<vmem>>, vector<8x28xf32>
    %cst_133 = arith.constant dense<0.000000e+00> : vector<8x128xf32>
    %480 = tpu.matmul %479, %477, %cst_133 {dimension_numbers = #tpu.dot_dimension_numbers<[1], [0], [0], [1], [0, 0, 1, 1], [], []>} : vector<8x28xf32>, vector<28x128xf32>, vector<8x128xf32> -> vector<8x128xf32>
    %481 = vector.broadcast %478 : vector<8x1xf32> to vector<8x128xf32>
    %482 = arith.addf %480, %481 : vector<8x128xf32>
    %483 = vector.extract_strided_slice %30 {offsets = [0, 20], sizes = [8, 1], strides = [1, 1]} : vector<8x22xf32> to vector<8x1xf32>
    %484 = vector.extract_strided_slice %30 {offsets = [0, 21], sizes = [8, 1], strides = [1, 1]} : vector<8x22xf32> to vector<8x1xf32>
    %485 = vector.broadcast %29 : vector<1x128xf32> to vector<8x128xf32>
    %486 = arith.mulf %482, %485 : vector<8x128xf32>
    %cst_134 = arith.constant dense<0.000000e+00> : vector<8xf32>
    %487 = vector.multi_reduction <add>, %486, %cst_134 [1] : vector<8x128xf32> to vector<8xf32>
    %488 = vector.shape_cast %487 : vector<8xf32> to vector<8x1xf32>
    %cst_135 = arith.constant 3.125000e-02 : f32
    %489 = vector.broadcast %cst_135 : f32 to vector<8x1xf32>
    %490 = arith.mulf %488, %489 : vector<8x1xf32>
    %491 = arith.mulf %486, %486 : vector<8x128xf32>
    %cst_136 = arith.constant dense<0.000000e+00> : vector<8xf32>
    %492 = vector.multi_reduction <add>, %491, %cst_136 [1] : vector<8x128xf32> to vector<8xf32>
    %493 = vector.shape_cast %492 : vector<8xf32> to vector<8x1xf32>
    %cst_137 = arith.constant 3.125000e-02 : f32
    %494 = vector.broadcast %cst_137 : f32 to vector<8x1xf32>
    %495 = arith.mulf %493, %494 : vector<8x1xf32>
    %496 = arith.mulf %490, %490 : vector<8x1xf32>
    %497 = arith.subf %495, %496 : vector<8x1xf32>
    %cst_138 = arith.constant 0.000000e+00 : f32
    %498 = vector.broadcast %cst_138 : f32 to vector<8x1xf32>
    %499 = arith.maximumf %497, %498 : vector<8x1xf32>
    %cst_139 = arith.constant 9.99999974E-6 : f32
    %500 = vector.broadcast %cst_139 : f32 to vector<8x1xf32>
    %501 = arith.addf %499, %500 : vector<8x1xf32>
    %502 = math.rsqrt %501 : vector<8x1xf32>
    %503 = arith.mulf %483, %502 : vector<8x1xf32>
    %504 = arith.mulf %490, %503 : vector<8x1xf32>
    %505 = arith.subf %484, %504 : vector<8x1xf32>
    %506 = vector.broadcast %503 : vector<8x1xf32> to vector<8x128xf32>
    %507 = arith.mulf %482, %506 : vector<8x128xf32>
    %508 = vector.broadcast %505 : vector<8x1xf32> to vector<8x128xf32>
    %509 = arith.addf %507, %508 : vector<8x128xf32>
    %510 = arith.addf %310, %509 : vector<8x128xf32>
    %c0_140 = arith.constant 0 : index
    %c0_141 = arith.constant 0 : index
    %511 = vector.load %arg6[%c0_140, %c0_141] : memref<8x128xf32, #tpu.memory_space<vmem>>, vector<8x128xf32>
    tpu.vector_store %arg6[%c0_140, %c0_141], %510 {strides = array<i32>} : memref<8x128xf32, #tpu.memory_space<vmem>>, vector<8x128xf32>,
    return
  }
}

</mosaic_0001>

<llo_original>
// kernel: block_forward.1
$region0: #{block_forward.1}
  #allocation0 [shape = 'u32[]', space=smem, size = 0x4, offset = 0x4, fixed_abs, tag = 'smem constant byte address 0x4 - core index']
  #allocation1 [shape = 'u32[144,128]{1,0:T(1,128)}', space=vmem, size = 0x12000, scoped, tag = 'internal scratch']
  %s0 = inlined_call_operand.vmem [shape: f32[8,128], index: 0, kind: input, shape index: {}]
  %s1 = inlined_call_operand.vmem [shape: f32[8,8], index: 1, kind: input, shape index: {}]
  %s2 = inlined_call_operand.vmem [shape: f32[28,8], index: 2, kind: input, shape index: {}]
  %s3 = inlined_call_operand.vmem [shape: f32[8,28], index: 3, kind: input, shape index: {}]
  %s4 = inlined_call_operand.vmem [shape: f32[8,22], index: 4, kind: input, shape index: {}]
  %s5 = inlined_call_operand.vmem [shape: f32[28,9], index: 5, kind: input, shape index: {}]
  %s6 = inlined_call_operand.vmem [shape: f32[8,128], index: 6, kind: output, shape index: {}]
  %s7 = sld [smem:[#allocation0]]
  $region34: #{block_forward.1} parent=0
    _
  %s9 = ssub.s32 1, %s7
  %s10 = scalar_select 0, %s9, %s7
  // Predicated region
  $region2: #{block_forward.1} parent=0 // pred_check
    _
  $region3: #{block_forward.1} parent=0 // pred_check_branch
    %12 = sbr.rel (0) target = $region5
  $region4: #{block_forward.1} parent=0 // pred_region
    _
  $region5: #{block_forward.1} parent=0 // pred_fallthru
    _
  // Predicated region
  $region6: #{block_forward.1} parent=0 // pred_check
    _
  $region7: #{block_forward.1} parent=0 // pred_check_branch
    %14 = sbr.rel (0) target = $region9
  $region8: #{block_forward.1} parent=0 // pred_region
    _
  $region9: #{block_forward.1} parent=0 // pred_fallthru
    _
  // Predicated region
  $region10: #{block_forward.1} parent=0 // pred_check
    _
  $region11: #{block_forward.1} parent=0 // pred_check_branch
    %16 = sbr.rel (0) target = $region13
  $region12: #{block_forward.1} parent=0 // pred_region
    _
  $region13: #{block_forward.1} parent=0 // pred_fallthru
    _
  // Predicated region
  $region14: #{block_forward.1} parent=0 // pred_check
    _
  $region15: #{block_forward.1} parent=0 // pred_check_branch
    %18 = sbr.rel (0) target = $region17
  $region16: #{block_forward.1} parent=0 // pred_region
    _
  $region17: #{block_forward.1} parent=0 // pred_fallthru
    _
  // Predicated region
  $region18: #{block_forward.1} parent=0 // pred_check
    _
  $region19: #{block_forward.1} parent=0 // pred_check_branch
    %20 = sbr.rel (0) target = $region21
  $region20: #{block_forward.1} parent=0 // pred_region
    _
  $region21: #{block_forward.1} parent=0 // pred_fallthru
    _
  // Predicated region
  $region22: #{block_forward.1} parent=0 // pred_check
    _
  $region23: #{block_forward.1} parent=0 // pred_check_branch
    %22 = sbr.rel (0) target = $region25
  $region24: #{block_forward.1} parent=0 // pred_region
    _
  $region25: #{block_forward.1} parent=0 // pred_fallthru
    _
  %v23 = vld [vmem:[%s0] sm:$0xff]
  %v24 = vlaneseq
  %v25 = vand.u32 %v24, 127
  %vm26 = vcmp.lt.s32.totalorder %v25, 0
  %v27 = vsub.s32 0, %v25
  %v28 = vsel %vm26, %v27, %v25
  %v29 = vshrl.u32 %v28, 4
  %v30 = vand.u32 %v28, 15
  %v31 = vsub.s32 0, %v30
  %v32 = vsel %vm26, %v31, %v30
  %vm33 = vcmp.ne.s32.totalorder %v32, 0
  %vm34 = vcmp.lt.s32.totalorder %v32, 0
  %vm35 = vmand %vm34, %vm33
  %v36 = vadd.s32 %v32, 16
  %v37 = vsel %vm35, %v36, %v32
  %vm38 = vcmp.ne.s32.totalorder %v37, 0
  %v39 = vsel %vm38, 1, 0
  %v40 = vcvt.s32.f32 %v39
  %vm41 = vcmp.ne.s32.totalorder %v37, 15
  %v42 = vsel %vm41, 1, 0
  %v43 = vcvt.s32.f32 %v42
  %vm44 = vcmp.lt.s32.totalorder %v25, 32
  %v45 = vsel %vm44, 1, 0
  %v46 = vcvt.s32.f32 %v45
  %v47 = vld [vmem:[%s4] sm:$0xff]
  %v48 = vld [vmem:[%s5] sm:$0xff]
  %v49 = vld [vmem:[%s5 + $0x8] sm:$0xff]
  %v50 = vld [vmem:[%s5 + $0x10] sm:$0xff]
  %v51 = vld [vmem:[%s5 + $0x18] sm:$0xf]
  %v52 = vld [vmem:[%s1] sm:$0xff]
  %54 = vset.pattern.permute.xlu0 0
  %55 = vperm.xlu0 %54, %v47
  %v56 = vpop.permute.xlu0 %55
  %vm58 = vcmask 64512
  %v60 = vsel %vm58, %v52, 0
  %62 = vmatprep.subr.mxu0 0.0
  %63 = vmatpush1.msra.mxu0 0.0
  %64 = vmatprep.subr.mxu0 0.0
  %65 = vmatpush1.msra.mxu0 0.0
  %66 = vmatprep.subr.mxu0 0.0
  %67 = vmatpush1.msra.mxu0 0.0
  %68 = vmatprep.subr.mxu0 0.0
  %69 = vmatpush1.msra.mxu0 0.0
  %70 = vmatprep.subr.mxu0 0.0
  %71 = vmatpush1.msra.mxu0 0.0
  %72 = vmatprep.subr.mxu0 0.0
  %73 = vmatpush1.msra.mxu0 0.0
  %74 = vmatprep.subr.mxu0 0.0
  %75 = vmatpush1.msra.mxu0 0.0
  %76 = vmatprep.subr.mxu0 0.0
  %77 = vmatpush1.msra.mxu0 0.0
  %78 = vmatprep.subr.mxu0 0.0
  %79 = vmatpush1.msra.mxu0 0.0
  %80 = vmatprep.subr.mxu0 0.0
  %81 = vmatpush1.msra.mxu0 0.0
  %82 = vmatprep.subr.mxu0 0.0
  %83 = vmatpush1.msra.mxu0 0.0
  %84 = vmatprep.subr.mxu0 0.0
  %85 = vmatpush1.msra.mxu0 0.0
  %86 = vmatprep.subr.mxu0 0.0
  %87 = vmatpush1.msra.mxu0 0.0
  %88 = vmatprep.subr.mxu0 0.0
  %89 = vmatpush1.msra.mxu0 0.0
  %90 = vmatprep.subr.mxu0 0.0
  %91 = vmatpush1.msra.mxu0 0.0
  %92 = vmatprep.subr.mxu0 0.0
  %93 = vmatpush1.msra.mxu0 %v23
  %94 = vmatprep.subr.mxu0 0.0
  %95 = vmatpush2.msra.mxu0 0.0
  %96 = vmatprep.subr.mxu0 0.0
  %97 = vmatpush2.msra.mxu0 0.0
  %98 = vmatprep.subr.mxu0 0.0
  %99 = vmatpush2.msra.mxu0 0.0
  %100 = vmatprep.subr.mxu0 0.0
  %101 = vmatpush2.msra.mxu0 0.0
  %102 = vmatprep.subr.mxu0 0.0
  %103 = vmatpush2.msra.mxu0 0.0
  %104 = vmatprep.subr.mxu0 0.0
  %105 = vmatpush2.msra.mxu0 0.0
  %106 = vmatprep.subr.mxu0 0.0
  %107 = vmatpush2.msra.mxu0 0.0
  %108 = vmatprep.subr.mxu0 0.0
  %109 = vmatpush2.msra.mxu0 0.0
  %110 = vmatprep.subr.mxu0 0.0
  %111 = vmatpush2.msra.mxu0 0.0
  %112 = vmatprep.subr.mxu0 0.0
  %113 = vmatpush2.msra.mxu0 0.0
  %114 = vmatprep.subr.mxu0 0.0
  %115 = vmatpush2.msra.mxu0 0.0
  %116 = vmatprep.subr.mxu0 0.0
  %117 = vmatpush2.msra.mxu0 0.0
  %118 = vmatprep.subr.mxu0 0.0
  %119 = vmatpush2.msra.mxu0 0.0
  %120 = vmatprep.subr.mxu0 0.0
  %121 = vmatpush2.msra.mxu0 0.0
  %122 = vmatprep.subr.mxu0 0.0
  %123 = vmatpush2.msra.mxu0 0.0
  %124 = vmatprep.subr.mxu0 0.0
  %125 = vmatpush2.msra.mxu0 0.0
  %126 = vmatprep.mubr.f32.mxu0 0.0
  %127 = vmatmul.mubr.f32.gmra.mxu0 %v60
  %v128 = vpop.f32.mrf.mxu0
  %v129 = vadd.f32 %v56, %v128
  %v130 = vpop.f32.mrf.mxu0
  %131 = vdwg.mxu0
  %v132 = vadd.f32 %v129, %v23
  %133 = vrot.lane.b32.xlu0 %v132, 1
  %v134 = vpop.permute.xlu0 %133
  %v135 = vmul.f32 %v134, %v40
  %136 = vrot.lane.b32.xlu0 %v132, 127
  %v137 = vpop.permute.xlu0 %136
  %v138 = vmul.f32 %v137, %v43
  %139 = vset.pattern.permute.xlu0 10
  %140 = vperm.xlu0 %139, %v47
  %v141 = vpop.permute.xlu0 %140
  %v143 = vmul.f32 %v141, %v135
  %144 = vset.pattern.permute.xlu0 11
  %145 = vperm.xlu0 %144, %v47
  %v146 = vpop.permute.xlu0 %145
  %v148 = vmul.f32 %v146, %v132
  %v149 = vadd.f32 %v143, %v148
  %150 = vset.pattern.permute.xlu0 12
  %151 = vperm.xlu0 %150, %v47
  %v152 = vpop.permute.xlu0 %151
  %v154 = vmul.f32 %v152, %v138
  %v155 = vadd.f32 %v149, %v154
  %156 = vset.pattern.permute.xlu0 1
  %157 = vperm.xlu0 %156, %v47
  %v158 = vpop.permute.xlu0 %157
  %v160 = vadd.f32 %v155, %v158
  %v161 = vmul.f32 %v160, 0.5
  %v162 = vmul.f32 %v160, 0.70710677
  %vm163 = vcmp.ge.f32.partialorder %v162, 0.0
  %v164 = vsel %vm163, 1.0, -1.0
  %v165 = vand.u32 2147483647, %v162
  %v166 = vmul.f32 %v165, 0.3275911
  %v167 = vadd.f32 %v166, 1.0
  %v168 = vrcp.pop %v167
  %v169 = vmul.f32 %v167, %v168
  %v170 = vsub.f32 2.0, %v169
  %v171 = vmul.f32 %v168, %v170
  %v172 = vmul.f32 %v171, 1.0614054
  %v173 = vadd.f32 %v172, -1.4531521
  %v174 = vmul.f32 %v171, %v173
  %v175 = vadd.f32 %v174, 1.4214138
  %v176 = vmul.f32 %v171, %v175
  %v177 = vadd.f32 %v176, -0.28449672
  %v178 = vmul.f32 %v171, %v177
  %v179 = vadd.f32 %v178, 0.2548296
  %v180 = vmul.f32 %v171, %v179
  %v181 = vsub.f32 0.0, %v165
  %v182 = vmul.f32 %v181, %v165
  %v183 = vmul.f32 %v182, 1.442695
  %v184 = vpow.pop %v183
  %v185 = vmul.f32 %v180, %v184
  %v186 = vsub.f32 1.0, %v185
  %v187 = vmul.f32 %v164, %v186
  %v188 = vadd.f32 %v187, 1.0
  %v189 = vmul.f32 %v161, %v188
  %v190 = vmul.f32 %v189, %v46
  %191 = vadd.xlane.f32.xlu0 %v190
  %v192 = vpop.xlane.xlu0 %191
  %v193 = vmul.f32 %v192, 0.03125
  %v194 = vmul.f32 %v190, %v190
  %195 = vadd.xlane.f32.xlu0 %v194
  %v196 = vpop.xlane.xlu0 %195
  %v197 = vmul.f32 %v196, 0.03125
  %v198 = vmul.f32 %v193, %v193
  %v199 = vsub.f32 %v197, %v198
  %v200 = vmax.f32 %v199, 0.0
  %v201 = vadd.f32 %v200, 1e-05
  %v202 = vrsqrt.pop %v201
  %v203 = vmul.f32 %v47, %v202
  %v204 = vmul.f32 %v193, %v203
  %206 = vrot.lane.b32.xlu0 %v204, 3
  %v207 = vpop.permute.xlu0 %206
  %v209 = vsub.f32 %v47, %v207
  %211 = vset.pattern.permute.xlu0 4
  %212 = vperm.xlu0 %211, %v203
  %v213 = vpop.permute.xlu0 %212
  %v215 = vmul.f32 %v189, %v213
  %217 = vset.pattern.permute.xlu0 7
  %218 = vperm.xlu0 %217, %v209
  %v219 = vpop.permute.xlu0 %218
  %v221 = vadd.f32 %v215, %v219
  %222 = vrot.lane.b32.xlu0 %v221, 1
  %v223 = vpop.permute.xlu0 %222
  %v224 = vmul.f32 %v223, %v40
  %225 = vrot.lane.b32.xlu0 %v221, 127
  %v226 = vpop.permute.xlu0 %225
  %v227 = vmul.f32 %v226, %v43
  %228 = vset.pattern.permute.xlu0 13
  %229 = vperm.xlu0 %228, %v47
  %v230 = vpop.permute.xlu0 %229
  %v232 = vmul.f32 %v230, %v224
  %233 = vset.pattern.permute.xlu0 14
  %234 = vperm.xlu0 %233, %v47
  %v235 = vpop.permute.xlu0 %234
  %v237 = vmul.f32 %v235, %v221
  %v238 = vadd.f32 %v232, %v237
  %239 = vset.pattern.permute.xlu0 15
  %240 = vperm.xlu0 %239, %v47
  %v241 = vpop.permute.xlu0 %240
  %v243 = vmul.f32 %v241, %v227
  %v244 = vadd.f32 %v238, %v243
  %245 = vset.pattern.permute.xlu0 2
  %246 = vperm.xlu0 %245, %v47
  %v247 = vpop.permute.xlu0 %246
  %v249 = vadd.f32 %v244, %v247
  %v250 = vmul.f32 %v249, 0.5
  %v251 = vmul.f32 %v249, 0.70710677
  %vm252 = vcmp.ge.f32.partialorder %v251, 0.0
  %v253 = vsel %vm252, 1.0, -1.0
  %v254 = vand.u32 2147483647, %v251
  %v255 = vmul.f32 %v254, 0.3275911
  %v256 = vadd.f32 %v255, 1.0
  %v257 = vrcp.pop %v256
  %v258 = vmul.f32 %v256, %v257
  %v259 = vsub.f32 2.0, %v258
  %v260 = vmul.f32 %v257, %v259
  %v261 = vmul.f32 %v260, 1.0614054
  %v262 = vadd.f32 %v261, -1.4531521
  %v263 = vmul.f32 %v260, %v262
  %v264 = vadd.f32 %v263, 1.4214138
  %v265 = vmul.f32 %v260, %v264
  %v266 = vadd.f32 %v265, -0.28449672
  %v267 = vmul.f32 %v260, %v266
  %v268 = vadd.f32 %v267, 0.2548296
  %v269 = vmul.f32 %v260, %v268
  %v270 = vsub.f32 0.0, %v254
  %v271 = vmul.f32 %v270, %v254
  %v272 = vmul.f32 %v271, 1.442695
  %v273 = vpow.pop %v272
  %v274 = vmul.f32 %v269, %v273
  %v275 = vsub.f32 1.0, %v274
  %v276 = vmul.f32 %v253, %v275
  %v277 = vadd.f32 %v276, 1.0
  %v278 = vmul.f32 %v250, %v277
  %v279 = vmul.f32 %v278, %v46
  %280 = vadd.xlane.f32.xlu0 %v279
  %v281 = vpop.xlane.xlu0 %280
  %v282 = vmul.f32 %v281, 0.03125
  %v283 = vmul.f32 %v279, %v279
  %284 = vadd.xlane.f32.xlu0 %v283
  %v285 = vpop.xlane.xlu0 %284
  %v286 = vmul.f32 %v285, 0.03125
  %v287 = vmul.f32 %v282, %v282
  %v288 = vsub.f32 %v286, %v287
  %v289 = vmax.f32 %v288, 0.0
  %v290 = vadd.f32 %v289, 1e-05
  %v291 = vrsqrt.pop %v290
  %v292 = vmul.f32 %v47, %v291
  %v293 = vmul.f32 %v282, %v292
  %295 = vrot.lane.b32.xlu0 %v293, 3
  %v296 = vpop.permute.xlu0 %295
  %v298 = vsub.f32 %v47, %v296
  %300 = vset.pattern.permute.xlu0 5
  %301 = vperm.xlu0 %300, %v292
  %v302 = vpop.permute.xlu0 %301
  %v304 = vmul.f32 %v278, %v302
  %306 = vset.pattern.permute.xlu0 8
  %307 = vperm.xlu0 %306, %v298
  %v308 = vpop.permute.xlu0 %307
  %v310 = vadd.f32 %v304, %v308
  %311 = vrot.lane.b32.xlu0 %v310, 1
  %v312 = vpop.permute.xlu0 %311
  %v313 = vmul.f32 %v312, %v40
  %314 = vrot.lane.b32.xlu0 %v310, 127
  %v315 = vpop.permute.xlu0 %314
  %v316 = vmul.f32 %v315, %v43
  %317 = vset.pattern.permute.xlu0 16
  %318 = vperm.xlu0 %317, %v47
  %v319 = vpop.permute.xlu0 %318
  %v321 = vmul.f32 %v319, %v313
  %322 = vset.pattern.permute.xlu0 17
  %323 = vperm.xlu0 %322, %v47
  %v324 = vpop.permute.xlu0 %323
  %v326 = vmul.f32 %v324, %v310
  %v327 = vadd.f32 %v321, %v326
  %328 = vset.pattern.permute.xlu0 18
  %329 = vperm.xlu0 %328, %v47
  %v330 = vpop.permute.xlu0 %329
  %v332 = vmul.f32 %v330, %v316
  %v333 = vadd.f32 %v327, %v332
  %334 = vset.pattern.permute.xlu0 3
  %335 = vperm.xlu0 %334, %v47
  %v336 = vpop.permute.xlu0 %335
  %v338 = vadd.f32 %v333, %v336
  %v339 = vmul.f32 %v338, 0.5
  %v340 = vmul.f32 %v338, 0.70710677
  %vm341 = vcmp.ge.f32.partialorder %v340, 0.0
  %v342 = vsel %vm341, 1.0, -1.0
  %v343 = vand.u32 2147483647, %v340
  %v344 = vmul.f32 %v343, 0.3275911
  %v345 = vadd.f32 %v344, 1.0
  %v346 = vrcp.pop %v345
  %v347 = vmul.f32 %v345, %v346
  %v348 = vsub.f32 2.0, %v347
  %v349 = vmul.f32 %v346, %v348
  %v350 = vmul.f32 %v349, 1.0614054
  %v351 = vadd.f32 %v350, -1.4531521
  %v352 = vmul.f32 %v349, %v351
  %v353 = vadd.f32 %v352, 1.4214138
  %v354 = vmul.f32 %v349, %v353
  %v355 = vadd.f32 %v354, -0.28449672
  %v356 = vmul.f32 %v349, %v355
  %v357 = vadd.f32 %v356, 0.2548296
  %v358 = vmul.f32 %v349, %v357
  %v359 = vsub.f32 0.0, %v343
  %v360 = vmul.f32 %v359, %v343
  %v361 = vmul.f32 %v360, 1.442695
  %v362 = vpow.pop %v361
  %v363 = vmul.f32 %v358, %v362
  %v364 = vsub.f32 1.0, %v363
  %v365 = vmul.f32 %v342, %v364
  %v366 = vadd.f32 %v365, 1.0
  %v367 = vmul.f32 %v339, %v366
  %v368 = vmul.f32 %v367, %v46
  %369 = vadd.xlane.f32.xlu0 %v368
  %v370 = vpop.xlane.xlu0 %369
  %v371 = vmul.f32 %v370, 0.03125
  %v372 = vmul.f32 %v368, %v368
  %373 = vadd.xlane.f32.xlu0 %v372
  %v374 = vpop.xlane.xlu0 %373
  %v375 = vmul.f32 %v374, 0.03125
  %v376 = vmul.f32 %v371, %v371
  %v377 = vsub.f32 %v375, %v376
  %v378 = vmax.f32 %v377, 0.0
  %v379 = vadd.f32 %v378, 1e-05
  %v380 = vrsqrt.pop %v379
  %v381 = vmul.f32 %v47, %v380
  %v382 = vmul.f32 %v371, %v381
  %384 = vrot.lane.b32.xlu0 %v382, 3
  %v385 = vpop.permute.xlu0 %384
  %v387 = vsub.f32 %v47, %v385
  %389 = vset.pattern.permute.xlu0 6
  %390 = vperm.xlu0 %389, %v381
  %v391 = vpop.permute.xlu0 %390
  %v393 = vmul.f32 %v367, %v391
  %395 = vset.pattern.permute.xlu0 9
  %396 = vperm.xlu0 %395, %v387
  %v397 = vpop.permute.xlu0 %396
  %v399 = vadd.f32 %v393, %v397
  %v400 = vld [vmem:[%s2] sm:$0xff]
  %v401 = vld [vmem:[%s2 + $0x8] sm:$0xff]
  %v402 = vld [vmem:[%s2 + $0x10] sm:$0xff]
  %v403 = vld [vmem:[%s2 + $0x18] sm:$0xf]
  %405 = vset.pattern.permute.xlu0 0
  %406 = vperm.xlu0 %405, %v48
  %v407 = vpop.permute.xlu0 %406
  %410 = vset.pattern.permute.xlu0 0
  %411 = vperm.xlu0 %410, %v49
  %v412 = vpop.permute.xlu0 %411
  %415 = vset.pattern.permute.xlu0 0
  %416 = vperm.xlu0 %415, %v50
  %v417 = vpop.permute.xlu0 %416
  %420 = vset.pattern.permute.xlu0 0
  %421 = vperm.xlu0 %420, %v51
  %v422 = vpop.permute.xlu0 %421
  %v425 = vsel %vm58, %v400, 0
  %v428 = vsel %vm58, %v401, 0
  %v431 = vsel %vm58, %v402, 0
  %v434 = vsel %vm58, %v403, 0
  %436 = vmatprep.subr.mxu0 0.0
  %437 = vmatpush1.msra.mxu0 0.0
  %438 = vmatprep.subr.mxu0 0.0
  %439 = vmatpush1.msra.mxu0 0.0
  %440 = vmatprep.subr.mxu0 0.0
  %441 = vmatpush1.msra.mxu0 0.0
  %442 = vmatprep.subr.mxu0 0.0
  %443 = vmatpush1.msra.mxu0 0.0
  %444 = vmatprep.subr.mxu0 0.0
  %445 = vmatpush1.msra.mxu0 0.0
  %446 = vmatprep.subr.mxu0 0.0
  %447 = vmatpush1.msra.mxu0 0.0
  %448 = vmatprep.subr.mxu0 0.0
  %449 = vmatpush1.msra.mxu0 0.0
  %450 = vmatprep.subr.mxu0 0.0
  %451 = vmatpush1.msra.mxu0 0.0
  %452 = vmatprep.subr.mxu0 0.0
  %453 = vmatpush1.msra.mxu0 0.0
  %454 = vmatprep.subr.mxu0 0.0
  %455 = vmatpush1.msra.mxu0 0.0
  %456 = vmatprep.subr.mxu0 0.0
  %457 = vmatpush1.msra.mxu0 0.0
  %458 = vmatprep.subr.mxu0 0.0
  %459 = vmatpush1.msra.mxu0 0.0
  %460 = vmatprep.subr.mxu0 0.0
  %461 = vmatpush1.msra.mxu0 0.0
  %462 = vmatprep.subr.mxu0 0.0
  %463 = vmatpush1.msra.mxu0 0.0
  %464 = vmatprep.subr.mxu0 0.0
  %465 = vmatpush1.msra.mxu0 0.0
  %466 = vmatprep.subr.mxu0 0.0
  %467 = vmatpush1.msra.mxu0 %v399
  %468 = vmatprep.subr.mxu0 0.0
  %469 = vmatpush2.msra.mxu0 0.0
  %470 = vmatprep.subr.mxu0 0.0
  %471 = vmatpush2.msra.mxu0 0.0
  %472 = vmatprep.subr.mxu0 0.0
  %473 = vmatpush2.msra.mxu0 0.0
  %474 = vmatprep.subr.mxu0 0.0
  %475 = vmatpush2.msra.mxu0 0.0
  %476 = vmatprep.subr.mxu0 0.0
  %477 = vmatpush2.msra.mxu0 0.0
  %478 = vmatprep.subr.mxu0 0.0
  %479 = vmatpush2.msra.mxu0 0.0
  %480 = vmatprep.subr.mxu0 0.0
  %481 = vmatpush2.msra.mxu0 0.0
  %482 = vmatprep.subr.mxu0 0.0
  %483 = vmatpush2.msra.mxu0 0.0
  %484 = vmatprep.subr.mxu0 0.0
  %485 = vmatpush2.msra.mxu0 0.0
  %486 = vmatprep.subr.mxu0 0.0
  %487 = vmatpush2.msra.mxu0 0.0
  %488 = vmatprep.subr.mxu0 0.0
  %489 = vmatpush2.msra.mxu0 0.0
  %490 = vmatprep.subr.mxu0 0.0
  %491 = vmatpush2.msra.mxu0 0.0
  %492 = vmatprep.subr.mxu0 0.0
  %493 = vmatpush2.msra.mxu0 0.0
  %494 = vmatprep.subr.mxu0 0.0
  %495 = vmatpush2.msra.mxu0 0.0
  %496 = vmatprep.subr.mxu0 0.0
  %497 = vmatpush2.msra.mxu0 0.0
  %498 = vmatprep.subr.mxu0 0.0
  %499 = vmatpush2.msra.mxu0 0.0
  %500 = vmatprep.mubr.f32.mxu0 0.0
  %501 = vmatmul.mubr.f32.gmra.mxu0 %v425
  %v502 = vpop.f32.mrf.mxu0
  %v503 = vadd.f32 %v407, %v502
  %v504 = vpop.f32.mrf.mxu0
  %505 = vmatprep.mubr.f32.mxu0 0.0
  %506 = vmatmul.mubr.f32.gmra.mxu0 %v428
  %v507 = vpop.f32.mrf.mxu0
  %v508 = vadd.f32 %v412, %v507
  %v509 = vpop.f32.mrf.mxu0
  %510 = vmatprep.mubr.f32.mxu0 0.0
  %511 = vmatmul.mubr.f32.gmra.mxu0 %v431
  %v512 = vpop.f32.mrf.mxu0
  %v513 = vadd.f32 %v417, %v512
  %v514 = vpop.f32.mrf.mxu0
  %515 = vmatprep.mubr.f32.mxu0 0.0
  %516 = vmatmul.mubr.f32.gmra.mxu0 %v434
  %v517 = vpop.f32.mrf.mxu0
  %v518 = vadd.f32 %v422, %v517
  %v519 = vpop.f32.mrf.mxu0
  %520 = vdwg.mxu0
  %v521 = vmul.f32 %v503, %v46
  %v522 = vmul.f32 %v508, %v46
  %v523 = vmul.f32 %v513, %v46
  %v524 = vmul.f32 %v518, %v46
  %525 = vadd.xlane.f32.xlu0 %v521
  %v526 = vpop.xlane.xlu0 %525
  %527 = vadd.xlane.f32.xlu0 %v522
  %v528 = vpop.xlane.xlu0 %527
  %529 = vadd.xlane.f32.xlu0 %v523
  %v530 = vpop.xlane.xlu0 %529
  %vm531 = vcmask 1043456
  %v532 = vsel %vm531, %v524, 0.0
  %533 = vadd.xlane.f32.xlu0 %v532
  %v534 = vpop.xlane.xlu0 %533
  %v535 = vmul.f32 %v526, 0.03125
  %v536 = vmul.f32 %v528, 0.03125
  %v537 = vmul.f32 %v530, 0.03125
  %v538 = vmul.f32 %v534, 0.03125
  %v539 = vmul.f32 %v521, %v521
  %v540 = vmul.f32 %v522, %v522
  %v541 = vmul.f32 %v523, %v523
  %v542 = vmul.f32 %v524, %v524
  %543 = vadd.xlane.f32.xlu0 %v539
  %v544 = vpop.xlane.xlu0 %543
  %545 = vadd.xlane.f32.xlu0 %v540
  %v546 = vpop.xlane.xlu0 %545
  %547 = vadd.xlane.f32.xlu0 %v541
  %v548 = vpop.xlane.xlu0 %547
  %v549 = vsel %vm531, %v542, 0.0
  %550 = vadd.xlane.f32.xlu0 %v549
  %v551 = vpop.xlane.xlu0 %550
  %v552 = vmul.f32 %v544, 0.03125
  %v553 = vmul.f32 %v546, 0.03125
  %v554 = vmul.f32 %v548, 0.03125
  %v555 = vmul.f32 %v551, 0.03125
  %v556 = vmul.f32 %v535, %v535
  %v557 = vmul.f32 %v536, %v536
  %v558 = vmul.f32 %v537, %v537
  %v559 = vmul.f32 %v538, %v538
  %v560 = vsub.f32 %v552, %v556
  %v561 = vsub.f32 %v553, %v557
  %v562 = vsub.f32 %v554, %v558
  %v563 = vsub.f32 %v555, %v559
  %v564 = vmax.f32 %v560, 0.0
  %v565 = vmax.f32 %v561, 0.0
  %v566 = vmax.f32 %v562, 0.0
  %v567 = vmax.f32 %v563, 0.0
  %v568 = vadd.f32 %v564, 1e-05
  %v569 = vadd.f32 %v565, 1e-05
  %v570 = vadd.f32 %v566, 1e-05
  %v571 = vadd.f32 %v567, 1e-05
  %v572 = vrsqrt.pop %v568
  %v573 = vrsqrt.pop %v569
  %v574 = vrsqrt.pop %v570
  %v575 = vrsqrt.pop %v571
  %v576 = vmul.f32 %v48, %v572
  %v577 = vmul.f32 %v49, %v573
  %v578 = vmul.f32 %v50, %v574
  %v579 = vmul.f32 %v51, %v575
  %v580 = vmul.f32 %v535, %v576
  %v581 = vmul.f32 %v536, %v577
  %v582 = vmul.f32 %v537, %v578
  %v583 = vmul.f32 %v538, %v579
  %588 = vrot.lane.b32.xlu0 %v580, 1
  %v589 = vpop.permute.xlu0 %588
  %590 = vrot.lane.b32.xlu0 %v581, 1
  %v591 = vpop.permute.xlu0 %590
  %592 = vrot.lane.b32.xlu0 %v582, 1
  %v593 = vpop.permute.xlu0 %592
  %594 = vrot.lane.b32.xlu0 %v583, 1
  %v595 = vpop.permute.xlu0 %594
  %v600 = vsub.f32 %v48, %v589
  %v601 = vsub.f32 %v49, %v591
  %v602 = vsub.f32 %v50, %v593
  %v603 = vsub.f32 %v51, %v595
  %605 = vset.pattern.permute.xlu0 1
  %606 = vperm.xlu0 %605, %v576
  %v607 = vpop.permute.xlu0 %606
  %610 = vset.pattern.permute.xlu0 1
  %611 = vperm.xlu0 %610, %v577
  %v612 = vpop.permute.xlu0 %611
  %615 = vset.pattern.permute.xlu0 1
  %616 = vperm.xlu0 %615, %v578
  %v617 = vpop.permute.xlu0 %616
  %620 = vset.pattern.permute.xlu0 1
  %621 = vperm.xlu0 %620, %v579
  %v622 = vpop.permute.xlu0 %621
  %v624 = vmul.f32 %v503, %v607
  %v625 = vmul.f32 %v508, %v612
  %v626 = vmul.f32 %v513, %v617
  %v627 = vmul.f32 %v518, %v622
  %629 = vset.pattern.permute.xlu0 2
  %630 = vperm.xlu0 %629, %v600
  %v631 = vpop.permute.xlu0 %630
  %634 = vset.pattern.permute.xlu0 2
  %635 = vperm.xlu0 %634, %v601
  %v636 = vpop.permute.xlu0 %635
  %639 = vset.pattern.permute.xlu0 2
  %640 = vperm.xlu0 %639, %v602
  %v641 = vpop.permute.xlu0 %640
  %644 = vset.pattern.permute.xlu0 2
  %645 = vperm.xlu0 %644, %v603
  %v646 = vpop.permute.xlu0 %645
  %v648 = vadd.f32 %v624, %v631
  %v649 = vadd.f32 %v625, %v636
  %v650 = vadd.f32 %v626, %v641
  %v651 = vadd.f32 %v627, %v646
  %v652 = vmul.f32 %v648, 0.5
  %v653 = vmul.f32 %v649, 0.5
  %v654 = vmul.f32 %v650, 0.5
  %v655 = vmul.f32 %v651, 0.5
  %v656 = vmul.f32 %v648, 0.70710677
  %v657 = vmul.f32 %v649, 0.70710677
  %v658 = vmul.f32 %v650, 0.70710677
  %v659 = vmul.f32 %v651, 0.70710677
  %vm660 = vcmp.ge.f32.partialorder %v656, 0.0
  %vm661 = vcmp.ge.f32.partialorder %v657, 0.0
  %vm662 = vcmp.ge.f32.partialorder %v658, 0.0
  %vm663 = vcmp.ge.f32.partialorder %v659, 0.0
  %v664 = vsel %vm660, 1.0, -1.0
  %v665 = vsel %vm661, 1.0, -1.0
  %v666 = vsel %vm662, 1.0, -1.0
  %v667 = vsel %vm663, 1.0, -1.0
  %v668 = vand.u32 2147483647, %v656
  %v669 = vand.u32 2147483647, %v657
  %v670 = vand.u32 2147483647, %v658
  %v671 = vand.u32 2147483647, %v659
  %v672 = vmul.f32 %v668, 0.3275911
  %v673 = vmul.f32 %v669, 0.3275911
  %v674 = vmul.f32 %v670, 0.3275911
  %v675 = vmul.f32 %v671, 0.3275911
  %v676 = vadd.f32 %v672, 1.0
  %v677 = vadd.f32 %v673, 1.0
  %v678 = vadd.f32 %v674, 1.0
  %v679 = vadd.f32 %v675, 1.0
  %v680 = vrcp.pop %v676
  %v681 = vrcp.pop %v677
  %v682 = vrcp.pop %v678
  %v683 = vrcp.pop %v679
  %v684 = vmul.f32 %v676, %v680
  %v685 = vmul.f32 %v677, %v681
  %v686 = vmul.f32 %v678, %v682
  %v687 = vmul.f32 %v679, %v683
  %v688 = vsub.f32 2.0, %v684
  %v689 = vsub.f32 2.0, %v685
  %v690 = vsub.f32 2.0, %v686
  %v691 = vsub.f32 2.0, %v687
  %v692 = vmul.f32 %v680, %v688
  %v693 = vmul.f32 %v681, %v689
  %v694 = vmul.f32 %v682, %v690
  %v695 = vmul.f32 %v683, %v691
  %v696 = vmul.f32 %v692, 1.0614054
  %v697 = vmul.f32 %v693, 1.0614054
  %v698 = vmul.f32 %v694, 1.0614054
  %v699 = vmul.f32 %v695, 1.0614054
  %v700 = vadd.f32 %v696, -1.4531521
  %v701 = vadd.f32 %v697, -1.4531521
  %v702 = vadd.f32 %v698, -1.4531521
  %v703 = vadd.f32 %v699, -1.4531521
  %v704 = vmul.f32 %v692, %v700
  %v705 = vmul.f32 %v693, %v701
  %v706 = vmul.f32 %v694, %v702
  %v707 = vmul.f32 %v695, %v703
  %v708 = vadd.f32 %v704, 1.4214138
  %v709 = vadd.f32 %v705, 1.4214138
  %v710 = vadd.f32 %v706, 1.4214138
  %v711 = vadd.f32 %v707, 1.4214138
  %v712 = vmul.f32 %v692, %v708
  %v713 = vmul.f32 %v693, %v709
  %v714 = vmul.f32 %v694, %v710
  %v715 = vmul.f32 %v695, %v711
  %v716 = vadd.f32 %v712, -0.28449672
  %v717 = vadd.f32 %v713, -0.28449672
  %v718 = vadd.f32 %v714, -0.28449672
  %v719 = vadd.f32 %v715, -0.28449672
  %v720 = vmul.f32 %v692, %v716
  %v721 = vmul.f32 %v693, %v717
  %v722 = vmul.f32 %v694, %v718
  %v723 = vmul.f32 %v695, %v719
  %v724 = vadd.f32 %v720, 0.2548296
  %v725 = vadd.f32 %v721, 0.2548296
  %v726 = vadd.f32 %v722, 0.2548296
  %v727 = vadd.f32 %v723, 0.2548296
  %v728 = vmul.f32 %v692, %v724
  %v729 = vmul.f32 %v693, %v725
  %v730 = vmul.f32 %v694, %v726
  %v731 = vmul.f32 %v695, %v727
  %v732 = vsub.f32 0.0, %v668
  %v733 = vsub.f32 0.0, %v669
  %v734 = vsub.f32 0.0, %v670
  %v735 = vsub.f32 0.0, %v671
  %v736 = vmul.f32 %v732, %v668
  %v737 = vmul.f32 %v733, %v669
  %v738 = vmul.f32 %v734, %v670
  %v739 = vmul.f32 %v735, %v671
  %v740 = vmul.f32 %v736, 1.442695
  %v741 = vpow.pop %v740
  %v742 = vmul.f32 %v737, 1.442695
  %v743 = vpow.pop %v742
  %v744 = vmul.f32 %v738, 1.442695
  %v745 = vpow.pop %v744
  %v746 = vmul.f32 %v739, 1.442695
  %v747 = vpow.pop %v746
  %v748 = vmul.f32 %v728, %v741
  %v749 = vmul.f32 %v729, %v743
  %v750 = vmul.f32 %v730, %v745
  %v751 = vmul.f32 %v731, %v747
  %v752 = vsub.f32 1.0, %v748
  %v753 = vsub.f32 1.0, %v749
  %v754 = vsub.f32 1.0, %v750
  %v755 = vsub.f32 1.0, %v751
  %v756 = vmul.f32 %v664, %v752
  %v757 = vmul.f32 %v665, %v753
  %v758 = vmul.f32 %v666, %v754
  %v759 = vmul.f32 %v667, %v755
  %v760 = vadd.f32 %v756, 1.0
  %v761 = vadd.f32 %v757, 1.0
  %v762 = vadd.f32 %v758, 1.0
  %v763 = vadd.f32 %v759, 1.0
  %v764 = vmul.f32 %v652, %v760
  %v765 = vmul.f32 %v653, %v761
  %v766 = vmul.f32 %v654, %v762
  %v767 = vmul.f32 %v655, %v763
  %768 = vrot.lane.b32.xlu0 %v764, 1
  %v769 = vpop.permute.xlu0 %768
  %770 = vrot.lane.b32.xlu0 %v765, 1
  %v771 = vpop.permute.xlu0 %770
  %772 = vrot.lane.b32.xlu0 %v766, 1
  %v773 = vpop.permute.xlu0 %772
  %774 = vrot.lane.b32.xlu0 %v767, 1
  %v775 = vpop.permute.xlu0 %774
  %v776 = vmul.f32 %v769, %v40
  %v777 = vmul.f32 %v771, %v40
  %v778 = vmul.f32 %v773, %v40
  %v779 = vmul.f32 %v775, %v40
  %780 = vrot.lane.b32.xlu0 %v764, 127
  %v781 = vpop.permute.xlu0 %780
  %782 = vrot.lane.b32.xlu0 %v765, 127
  %v783 = vpop.permute.xlu0 %782
  %784 = vrot.lane.b32.xlu0 %v766, 127
  %v785 = vpop.permute.xlu0 %784
  %786 = vrot.lane.b32.xlu0 %v767, 127
  %v787 = vpop.permute.xlu0 %786
  %v788 = vmul.f32 %v781, %v43
  %v789 = vmul.f32 %v783, %v43
  %v790 = vmul.f32 %v785, %v43
  %v791 = vmul.f32 %v787, %v43
  %792 = vset.pattern.permute.xlu0 3
  %793 = vperm.xlu0 %792, %v48
  %v794 = vpop.permute.xlu0 %793
  %796 = vset.pattern.permute.xlu0 3
  %797 = vperm.xlu0 %796, %v49
  %v798 = vpop.permute.xlu0 %797
  %800 = vset.pattern.permute.xlu0 3
  %801 = vperm.xlu0 %800, %v50
  %v802 = vpop.permute.xlu0 %801
  %804 = vset.pattern.permute.xlu0 3
  %805 = vperm.xlu0 %804, %v51
  %v806 = vpop.permute.xlu0 %805
  %v808 = vmul.f32 %v794, %v776
  %v809 = vmul.f32 %v798, %v777
  %v810 = vmul.f32 %v802, %v778
  %v811 = vmul.f32 %v806, %v779
  %812 = vset.pattern.permute.xlu0 4
  %813 = vperm.xlu0 %812, %v48
  %v814 = vpop.permute.xlu0 %813
  %816 = vset.pattern.permute.xlu0 4
  %817 = vperm.xlu0 %816, %v49
  %v818 = vpop.permute.xlu0 %817
  %820 = vset.pattern.permute.xlu0 4
  %821 = vperm.xlu0 %820, %v50
  %v822 = vpop.permute.xlu0 %821
  %824 = vset.pattern.permute.xlu0 4
  %825 = vperm.xlu0 %824, %v51
  %v826 = vpop.permute.xlu0 %825
  %v828 = vmul.f32 %v814, %v764
  %v829 = vmul.f32 %v818, %v765
  %v830 = vmul.f32 %v822, %v766
  %v831 = vmul.f32 %v826, %v767
  %v832 = vadd.f32 %v808, %v828
  %v833 = vadd.f32 %v809, %v829
  %v834 = vadd.f32 %v810, %v830
  %v835 = vadd.f32 %v811, %v831
  %836 = vset.pattern.permute.xlu0 5
  %837 = vperm.xlu0 %836, %v48
  %v838 = vpop.permute.xlu0 %837
  %840 = vset.pattern.permute.xlu0 5
  %841 = vperm.xlu0 %840, %v49
  %v842 = vpop.permute.xlu0 %841
  %844 = vset.pattern.permute.xlu0 5
  %845 = vperm.xlu0 %844, %v50
  %v846 = vpop.permute.xlu0 %845
  %848 = vset.pattern.permute.xlu0 5
  %849 = vperm.xlu0 %848, %v51
  %v850 = vpop.permute.xlu0 %849
  %v852 = vmul.f32 %v838, %v788
  %v853 = vmul.f32 %v842, %v789
  %v854 = vmul.f32 %v846, %v790
  %v855 = vmul.f32 %v850, %v791
  %v856 = vadd.f32 %v832, %v852
  %v857 = vadd.f32 %v833, %v853
  %v858 = vadd.f32 %v834, %v854
  %v859 = vadd.f32 %v835, %v855
  %860 = vset.pattern.permute.xlu0 6
  %861 = vperm.xlu0 %860, %v48
  %v862 = vpop.permute.xlu0 %861
  %864 = vset.pattern.permute.xlu0 6
  %865 = vperm.xlu0 %864, %v49
  %v866 = vpop.permute.xlu0 %865
  %868 = vset.pattern.permute.xlu0 6
  %869 = vperm.xlu0 %868, %v50
  %v870 = vpop.permute.xlu0 %869
  %872 = vset.pattern.permute.xlu0 6
  %873 = vperm.xlu0 %872, %v51
  %v874 = vpop.permute.xlu0 %873
  %v876 = vadd.f32 %v856, %v862
  %v877 = vadd.f32 %v857, %v866
  %v878 = vadd.f32 %v858, %v870
  %v879 = vadd.f32 %v859, %v874
  %v880 = vmul.f32 %v876, %v46
  %v881 = vmul.f32 %v877, %v46
  %v882 = vmul.f32 %v878, %v46
  %v883 = vmul.f32 %v879, %v46
  %884 = vadd.xlane.f32.xlu0 %v880
  %v885 = vpop.xlane.xlu0 %884
  %886 = vadd.xlane.f32.xlu0 %v881
  %v887 = vpop.xlane.xlu0 %886
  %888 = vadd.xlane.f32.xlu0 %v882
  %v889 = vpop.xlane.xlu0 %888
  %v890 = vsel %vm531, %v883, 0.0
  %891 = vadd.xlane.f32.xlu0 %v890
  %v892 = vpop.xlane.xlu0 %891
  %v893 = vmul.f32 %v885, 0.03125
  %v894 = vmul.f32 %v887, 0.03125
  %v895 = vmul.f32 %v889, 0.03125
  %v896 = vmul.f32 %v892, 0.03125
  %v897 = vmul.f32 %v880, %v880
  %v898 = vmul.f32 %v881, %v881
  %v899 = vmul.f32 %v882, %v882
  %v900 = vmul.f32 %v883, %v883
  %901 = vadd.xlane.f32.xlu0 %v897
  %v902 = vpop.xlane.xlu0 %901
  %903 = vadd.xlane.f32.xlu0 %v898
  %v904 = vpop.xlane.xlu0 %903
  %905 = vadd.xlane.f32.xlu0 %v899
  %v906 = vpop.xlane.xlu0 %905
  %v907 = vsel %vm531, %v900, 0.0
  %908 = vadd.xlane.f32.xlu0 %v907
  %v909 = vpop.xlane.xlu0 %908
  %v910 = vmul.f32 %v902, 0.03125
  %v911 = vmul.f32 %v904, 0.03125
  %v912 = vmul.f32 %v906, 0.03125
  %v913 = vmul.f32 %v909, 0.03125
  %v914 = vmul.f32 %v893, %v893
  %v915 = vmul.f32 %v894, %v894
  %v916 = vmul.f32 %v895, %v895
  %v917 = vmul.f32 %v896, %v896
  %v918 = vsub.f32 %v910, %v914
  %v919 = vsub.f32 %v911, %v915
  %v920 = vsub.f32 %v912, %v916
  %v921 = vsub.f32 %v913, %v917
  %v922 = vmax.f32 %v918, 0.0
  %v923 = vmax.f32 %v919, 0.0
  %v924 = vmax.f32 %v920, 0.0
  %v925 = vmax.f32 %v921, 0.0
  %v926 = vadd.f32 %v922, 1e-05
  %v927 = vadd.f32 %v923, 1e-05
  %v928 = vadd.f32 %v924, 1e-05
  %v929 = vadd.f32 %v925, 1e-05
  %v930 = vrsqrt.pop %v926
  %v931 = vrsqrt.pop %v927
  %v932 = vrsqrt.pop %v928
  %v933 = vrsqrt.pop %v929
  %v934 = vmul.f32 %v48, %v930
  %v935 = vmul.f32 %v49, %v931
  %v936 = vmul.f32 %v50, %v932
  %v937 = vmul.f32 %v51, %v933
  %v938 = vmul.f32 %v893, %v934
  %v939 = vmul.f32 %v894, %v935
  %v940 = vmul.f32 %v895, %v936
  %v941 = vmul.f32 %v896, %v937
  %946 = vrot.lane.b32.xlu0 %v938, 1
  %v947 = vpop.permute.xlu0 %946
  %948 = vrot.lane.b32.xlu0 %v939, 1
  %v949 = vpop.permute.xlu0 %948
  %950 = vrot.lane.b32.xlu0 %v940, 1
  %v951 = vpop.permute.xlu0 %950
  %952 = vrot.lane.b32.xlu0 %v941, 1
  %v953 = vpop.permute.xlu0 %952
  %v958 = vsub.f32 %v48, %v947
  %v959 = vsub.f32 %v49, %v949
  %v960 = vsub.f32 %v50, %v951
  %v961 = vsub.f32 %v51, %v953
  %963 = vset.pattern.permute.xlu0 7
  %964 = vperm.xlu0 %963, %v934
  %v965 = vpop.permute.xlu0 %964
  %968 = vset.pattern.permute.xlu0 7
  %969 = vperm.xlu0 %968, %v935
  %v970 = vpop.permute.xlu0 %969
  %973 = vset.pattern.permute.xlu0 7
  %974 = vperm.xlu0 %973, %v936
  %v975 = vpop.permute.xlu0 %974
  %978 = vset.pattern.permute.xlu0 7
  %979 = vperm.xlu0 %978, %v937
  %v980 = vpop.permute.xlu0 %979
  %v982 = vmul.f32 %v876, %v965
  %v983 = vmul.f32 %v877, %v970
  %v984 = vmul.f32 %v878, %v975
  %v985 = vmul.f32 %v879, %v980
  %987 = vset.pattern.permute.xlu0 8
  %988 = vperm.xlu0 %987, %v958
  %v989 = vpop.permute.xlu0 %988
  %992 = vset.pattern.permute.xlu0 8
  %993 = vperm.xlu0 %992, %v959
  %v994 = vpop.permute.xlu0 %993
  %997 = vset.pattern.permute.xlu0 8
  %998 = vperm.xlu0 %997, %v960
  %v999 = vpop.permute.xlu0 %998
  %1002 = vset.pattern.permute.xlu0 8
  %1003 = vperm.xlu0 %1002, %v961
  %v1004 = vpop.permute.xlu0 %1003
  %v1006 = vadd.f32 %v982, %v989
  %v1007 = vadd.f32 %v983, %v994
  %v1008 = vadd.f32 %v984, %v999
  %v1009 = vadd.f32 %v985, %v1004
  %v1010 = vmul.f32 %v1006, 0.5
  %v1011 = vmul.f32 %v1007, 0.5
  %v1012 = vmul.f32 %v1008, 0.5
  %v1013 = vmul.f32 %v1009, 0.5
  %v1014 = vmul.f32 %v1006, 0.70710677
  %v1015 = vmul.f32 %v1007, 0.70710677
  %v1016 = vmul.f32 %v1008, 0.70710677
  %v1017 = vmul.f32 %v1009, 0.70710677
  %vm1018 = vcmp.ge.f32.partialorder %v1014, 0.0
  %vm1019 = vcmp.ge.f32.partialorder %v1015, 0.0
  %vm1020 = vcmp.ge.f32.partialorder %v1016, 0.0
  %vm1021 = vcmp.ge.f32.partialorder %v1017, 0.0
  %v1022 = vsel %vm1018, 1.0, -1.0
  %v1023 = vsel %vm1019, 1.0, -1.0
  %v1024 = vsel %vm1020, 1.0, -1.0
  %v1025 = vsel %vm1021, 1.0, -1.0
  %v1026 = vand.u32 2147483647, %v1014
  %v1027 = vand.u32 2147483647, %v1015
  %v1028 = vand.u32 2147483647, %v1016
  %v1029 = vand.u32 2147483647, %v1017
  %v1030 = vmul.f32 %v1026, 0.3275911
  %v1031 = vmul.f32 %v1027, 0.3275911
  %v1032 = vmul.f32 %v1028, 0.3275911
  %v1033 = vmul.f32 %v1029, 0.3275911
  %v1034 = vadd.f32 %v1030, 1.0
  %v1035 = vadd.f32 %v1031, 1.0
  %v1036 = vadd.f32 %v1032, 1.0
  %v1037 = vadd.f32 %v1033, 1.0
  %v1038 = vrcp.pop %v1034
  %v1039 = vrcp.pop %v1035
  %v1040 = vrcp.pop %v1036
  %v1041 = vrcp.pop %v1037
  %v1042 = vmul.f32 %v1034, %v1038
  %v1043 = vmul.f32 %v1035, %v1039
  %v1044 = vmul.f32 %v1036, %v1040
  %v1045 = vmul.f32 %v1037, %v1041
  %v1046 = vsub.f32 2.0, %v1042
  %v1047 = vsub.f32 2.0, %v1043
  %v1048 = vsub.f32 2.0, %v1044
  %v1049 = vsub.f32 2.0, %v1045
  %v1050 = vmul.f32 %v1038, %v1046
  %v1051 = vmul.f32 %v1039, %v1047
  %v1052 = vmul.f32 %v1040, %v1048
  %v1053 = vmul.f32 %v1041, %v1049
  %v1054 = vmul.f32 %v1050, 1.0614054
  %v1055 = vmul.f32 %v1051, 1.0614054
  %v1056 = vmul.f32 %v1052, 1.0614054
  %v1057 = vmul.f32 %v1053, 1.0614054
  %v1058 = vadd.f32 %v1054, -1.4531521
  %v1059 = vadd.f32 %v1055, -1.4531521
  %v1060 = vadd.f32 %v1056, -1.4531521
  %v1061 = vadd.f32 %v1057, -1.4531521
  %v1062 = vmul.f32 %v1050, %v1058
  %v1063 = vmul.f32 %v1051, %v1059
  %v1064 = vmul.f32 %v1052, %v1060
  %v1065 = vmul.f32 %v1053, %v1061
  %v1066 = vadd.f32 %v1062, 1.4214138
  %v1067 = vadd.f32 %v1063, 1.4214138
  %v1068 = vadd.f32 %v1064, 1.4214138
  %v1069 = vadd.f32 %v1065, 1.4214138
  %v1070 = vmul.f32 %v1050, %v1066
  %v1071 = vmul.f32 %v1051, %v1067
  %v1072 = vmul.f32 %v1052, %v1068
  %v1073 = vmul.f32 %v1053, %v1069
  %v1074 = vadd.f32 %v1070, -0.28449672
  %v1075 = vadd.f32 %v1071, -0.28449672
  %v1076 = vadd.f32 %v1072, -0.28449672
  %v1077 = vadd.f32 %v1073, -0.28449672
  %v1078 = vmul.f32 %v1050, %v1074
  %v1079 = vmul.f32 %v1051, %v1075
  %v1080 = vmul.f32 %v1052, %v1076
  %v1081 = vmul.f32 %v1053, %v1077
  %v1082 = vadd.f32 %v1078, 0.2548296
  %v1083 = vadd.f32 %v1079, 0.2548296
  %v1084 = vadd.f32 %v1080, 0.2548296
  %v1085 = vadd.f32 %v1081, 0.2548296
  %v1086 = vmul.f32 %v1050, %v1082
  %v1087 = vmul.f32 %v1051, %v1083
  %v1088 = vmul.f32 %v1052, %v1084
  %v1089 = vmul.f32 %v1053, %v1085
  %v1090 = vsub.f32 0.0, %v1026
  %v1091 = vsub.f32 0.0, %v1027
  %v1092 = vsub.f32 0.0, %v1028
  %v1093 = vsub.f32 0.0, %v1029
  %v1094 = vmul.f32 %v1090, %v1026
  %v1095 = vmul.f32 %v1091, %v1027
  %v1096 = vmul.f32 %v1092, %v1028
  %v1097 = vmul.f32 %v1093, %v1029
  %v1098 = vmul.f32 %v1094, 1.442695
  %v1099 = vpow.pop %v1098
  %v1100 = vmul.f32 %v1095, 1.442695
  %v1101 = vpow.pop %v1100
  %v1102 = vmul.f32 %v1096, 1.442695
  %v1103 = vpow.pop %v1102
  %v1104 = vmul.f32 %v1097, 1.442695
  %v1105 = vpow.pop %v1104
  %v1106 = vmul.f32 %v1086, %v1099
  %v1107 = vmul.f32 %v1087, %v1101
  %v1108 = vmul.f32 %v1088, %v1103
  %v1109 = vmul.f32 %v1089, %v1105
  %v1110 = vsub.f32 1.0, %v1106
  %v1111 = vsub.f32 1.0, %v1107
  %v1112 = vsub.f32 1.0, %v1108
  %v1113 = vsub.f32 1.0, %v1109
  %v1114 = vmul.f32 %v1022, %v1110
  %v1115 = vmul.f32 %v1023, %v1111
  %v1116 = vmul.f32 %v1024, %v1112
  %v1117 = vmul.f32 %v1025, %v1113
  %v1118 = vadd.f32 %v1114, 1.0
  %v1119 = vadd.f32 %v1115, 1.0
  %v1120 = vadd.f32 %v1116, 1.0
  %v1121 = vadd.f32 %v1117, 1.0
  %v1122 = vmul.f32 %v1010, %v1118
  %v1123 = vmul.f32 %v1011, %v1119
  %v1124 = vmul.f32 %v1012, %v1120
  %v1125 = vmul.f32 %v1013, %v1121
  %v1126 = vld [vmem:[%s3] sm:$0xff]
  %1127 = vset.pattern.permute.xlu0 19
  %1128 = vperm.xlu0 %1127, %v47
  %v1129 = vpop.permute.xlu0 %1128
  %vm1131 = vcmask 228352
  %v1133 = vsel %vm1131, %v1126, 0
  %v1136 = vsel %vm531, %v1125, 0
  %1138 = vmatprep.subr.mxu0 0.0
  %1139 = vmatpush1.msra.mxu0 0.0
  %1140 = vmatprep.subr.mxu0 0.0
  %1141 = vmatpush1.msra.mxu0 0.0
  %1142 = vmatprep.subr.mxu0 0.0
  %1143 = vmatpush1.msra.mxu0 0.0
  %1144 = vmatprep.subr.mxu0 0.0
  %1145 = vmatpush1.msra.mxu0 0.0
  %1146 = vmatprep.subr.mxu0 0.0
  %1147 = vmatpush1.msra.mxu0 0.0
  %1148 = vmatprep.subr.mxu0 0.0
  %1149 = vmatpush1.msra.mxu0 0.0
  %1150 = vmatprep.subr.mxu0 0.0
  %1151 = vmatpush1.msra.mxu0 0.0
  %1152 = vmatprep.subr.mxu0 0.0
  %1153 = vmatpush1.msra.mxu0 0.0
  %1154 = vmatprep.subr.mxu0 0.0
  %1155 = vmatpush1.msra.mxu0 0.0
  %1156 = vmatprep.subr.mxu0 0.0
  %1157 = vmatpush1.msra.mxu0 0.0
  %1158 = vmatprep.subr.mxu0 0.0
  %1159 = vmatpush1.msra.mxu0 0.0
  %1160 = vmatprep.subr.mxu0 0.0
  %1161 = vmatpush1.msra.mxu0 0.0
  %1162 = vmatprep.subr.mxu0 0.0
  %1163 = vmatpush1.msra.mxu0 %v1136
  %1164 = vmatprep.subr.mxu0 0.0
  %1165 = vmatpush1.msra.mxu0 %v1124
  %1166 = vmatprep.subr.mxu0 0.0
  %1167 = vmatpush1.msra.mxu0 %v1123
  %1168 = vmatprep.subr.mxu0 0.0
  %1169 = vmatpush1.msra.mxu0 %v1122
  %1170 = vmatprep.subr.mxu0 0.0
  %1171 = vmatpush2.msra.mxu0 0.0
  %1172 = vmatprep.subr.mxu0 0.0
  %1173 = vmatpush2.msra.mxu0 0.0
  %1174 = vmatprep.subr.mxu0 0.0
  %1175 = vmatpush2.msra.mxu0 0.0
  %1176 = vmatprep.subr.mxu0 0.0
  %1177 = vmatpush2.msra.mxu0 0.0
  %1178 = vmatprep.subr.mxu0 0.0
  %1179 = vmatpush2.msra.mxu0 0.0
  %1180 = vmatprep.subr.mxu0 0.0
  %1181 = vmatpush2.msra.mxu0 0.0
  %1182 = vmatprep.subr.mxu0 0.0
  %1183 = vmatpush2.msra.mxu0 0.0
  %1184 = vmatprep.subr.mxu0 0.0
  %1185 = vmatpush2.msra.mxu0 0.0
  %1186 = vmatprep.subr.mxu0 0.0
  %1187 = vmatpush2.msra.mxu0 0.0
  %1188 = vmatprep.subr.mxu0 0.0
  %1189 = vmatpush2.msra.mxu0 0.0
  %1190 = vmatprep.subr.mxu0 0.0
  %1191 = vmatpush2.msra.mxu0 0.0
  %1192 = vmatprep.subr.mxu0 0.0
  %1193 = vmatpush2.msra.mxu0 0.0
  %1194 = vmatprep.subr.mxu0 0.0
  %1195 = vmatpush2.msra.mxu0 0.0
  %1196 = vmatprep.subr.mxu0 0.0
  %1197 = vmatpush2.msra.mxu0 0.0
  %1198 = vmatprep.subr.mxu0 0.0
  %1199 = vmatpush2.msra.mxu0 0.0
  %1200 = vmatprep.subr.mxu0 0.0
  %1201 = vmatpush2.msra.mxu0 0.0
  %1202 = vmatprep.mubr.f32.mxu0 0.0
  %1203 = vmatmul.mubr.f32.gmra.mxu0 %v1133
  %v1204 = vpop.f32.mrf.mxu0
  %v1205 = vadd.f32 %v1129, %v1204
  %v1206 = vpop.f32.mrf.mxu0
  %1207 = vdwg.mxu0
  %v1208 = vmul.f32 %v1205, %v46
  %1209 = vadd.xlane.f32.xlu0 %v1208
  %v1210 = vpop.xlane.xlu0 %1209
  %v1211 = vmul.f32 %v1210, 0.03125
  %v1212 = vmul.f32 %v1208, %v1208
  %1213 = vadd.xlane.f32.xlu0 %v1212
  %v1214 = vpop.xlane.xlu0 %1213
  %v1215 = vmul.f32 %v1214, 0.03125
  %v1216 = vmul.f32 %v1211, %v1211
  %v1217 = vsub.f32 %v1215, %v1216
  %v1218 = vmax.f32 %v1217, 0.0
  %v1219 = vadd.f32 %v1218, 1e-05
  %v1220 = vrsqrt.pop %v1219
  %v1221 = vmul.f32 %v47, %v1220
  %v1222 = vmul.f32 %v1211, %v1221
  %1224 = vrot.lane.b32.xlu0 %v1222, 1
  %v1225 = vpop.permute.xlu0 %1224
  %v1227 = vsub.f32 %v47, %v1225
  %1229 = vset.pattern.permute.xlu0 20
  %1230 = vperm.xlu0 %1229, %v1221
  %v1231 = vpop.permute.xlu0 %1230
  %v1233 = vmul.f32 %v1205, %v1231
  %1235 = vset.pattern.permute.xlu0 21
  %1236 = vperm.xlu0 %1235, %v1227
  %v1237 = vpop.permute.xlu0 %1236
  %v1239 = vadd.f32 %v1233, %v1237
  %v1240 = vadd.f32 %v399, %v1239
  %1241 = vst [vmem:[%s6] sm:$0xff] %v1240
  // Predicated region
  $region26: #{block_forward.1} parent=0 // pred_check
    _
  $region27: #{block_forward.1} parent=0 // pred_check_branch
    %1243 = sbr.rel (0) target = $region29
  $region28: #{block_forward.1} parent=0 // pred_region
    _
  $region29: #{block_forward.1} parent=0 // pred_fallthru
    _
  // Predicated region
  $region30: #{block_forward.1} parent=0 // pred_check
    _
  $region31: #{block_forward.1} parent=0 // pred_check_branch
    %1245 = sbr.rel (0) target = $region33
  $region32: #{block_forward.1} parent=0 // pred_region
    _
  $region33: #{block_forward.1} parent=0 // pred_fallthru
    _

</llo_original>
